<compile_context>
chip_gen: v7x
topology: tpu7x:2x2x1
jax: 0.10.0
libtpu: 0.0.40
codegen_flags: <defaults>
</compile_context>

<pallas_src>
import jax
import jax.numpy as jnp
from jax.experimental import pallas as pl
from jax.experimental.pallas import tpu as pltpu


def lstm_recurrence_kernel(gx_ref, w_hh_ref, h0_ref, c0_ref,
                           hseq_ref, hn_ref, cn_ref,
                           h_carry, c_carry):
    """One grid step = Tc LSTM timesteps for one batch block.

    gx_ref   : (Tc, Bb, 4H) cd    precomputed x@W_ih^T + b_ih + b_hh
    w_hh_ref : (H, 4H)      cd    recurrent weights (resident, single-buffered)
    h0_ref   : (Bb, H)      f32   initial hidden state (batch block)
    c0_ref   : (Bb, H)      f32   initial cell state   (batch block)
    hseq_ref : (Tc, Bb, H)  cd    hidden-state sequence output
    hn_ref   : (Bb, H)      f32   final hidden state (written on last step)
    cn_ref   : (Bb, H)      f32   final cell state   (written on last step)
    h_carry  : (Bb, H)      cd    VMEM scratch carry (compute dtype)
    c_carry  : (Bb, H)      f32   VMEM scratch carry
    """
    t_idx = pl.program_id(1)
    n_t = pl.num_programs(1)
    H = h0_ref.shape[1]
    t_chunk = gx_ref.shape[0]

    # Re-initialize the carry at the start of every batch block's time loop.
    @pl.when(t_idx == 0)
    def _():
        h_carry[...] = h0_ref[...].astype(h_carry.dtype)
        c_carry[...] = c0_ref[...]

    w_hh = w_hh_ref[...]  # resident (H, 4H) weights, read once per grid step

    def step(t, carry):
        h_cd, c = carry                                  # (cd, f32) carry
        # Only the thin recurrent GEMV stays inside the serial loop.
        gates = gx_ref[t].astype(jnp.float32) + jnp.dot(
            h_cd, w_hh, preferred_element_type=jnp.float32)   # (Bb, 4H) f32
        # PyTorch gate order [i, f, g, o].
        i_g = jax.nn.sigmoid(gates[:, 0:H])
        f_g = jax.nn.sigmoid(gates[:, H:2 * H])
        g_g = jnp.tanh(gates[:, 2 * H:3 * H])
        o_g = jax.nn.sigmoid(gates[:, 3 * H:4 * H])
        c_new = f_g * c + i_g * g_g
        # Single cast, reused for both the hseq store and next step's LHS.
        h_new = (o_g * jnp.tanh(c_new)).astype(h_carry.dtype)
        hseq_ref[t] = h_new
        return h_new, c_new

    # Unrolled so the LLO scheduler can overlap the GEMV with EUP/VPU work.
    h_f, c_f = jax.lax.fori_loop(
        0, t_chunk, step, (h_carry[...], c_carry[...]), unroll=True)
    h_carry[...] = h_f
    c_carry[...] = c_f

    @pl.when(t_idx == n_t - 1)
    def _():
        hn_ref[...] = h_f.astype(jnp.float32)
        cn_ref[...] = c_f


def label_encoder_forward(inputs, emb_table, w_ih, w_hh, b_ih, b_hh,
                          w_fc, b_fc, hidden_states=None, *,
                          time_chunk=8, batch_block=None):
    """inputs: int32 (B, T).

    Returns (output (B, T, D) f32, (h_n (1, B, H), c_n (1, B, H)) f32),
    matching PyTorch's batch_first LSTM + Linear.
    """
    B, T = inputs.shape
    H = emb_table.shape[1]
    D = w_fc.shape[0]

    # bf16 MXU feed only on a real TPU backend; f32 elsewhere (interpret/CPU
    # backends reject BF16xBF16=F32 dots).
    on_tpu = jax.default_backend() == "tpu"
    compute_dtype = jnp.bfloat16 if on_tpu else jnp.float32
    bpe = 2 if on_tpu else 4

    # ---- batch padding to the sublane granule (full, unmasked vregs) -------
    Bp = max(8, -(-B // 8) * 8)
    Bb = Bp if batch_block is None else batch_block
    assert Bp % Bb == 0 and Bb % 8 == 0

    # ---- time chunking: amortize per-grid-step overhead, gate on VMEM ------
    tc = max(1, min(time_chunk, T))
    while tc > 1 and (T % tc or 2 * tc * Bb * 4 * H * bpe > (12 << 20)):
        tc -= 1

    # ---------------- glue: large parallel GEMMs outside the recurrence -----
    # Gather first, cast after (no bf16 copy of the whole vocab table).
    x_tbh = jnp.take(emb_table, inputs.T, axis=0).astype(compute_dtype)  # (T,B,H)
    w_ih_t = w_ih.T.astype(compute_dtype)                                # (H,4H)

    # One flat MXU GEMM with M = T*B, f32 accumulation.
    gates_flat = jnp.dot(x_tbh.reshape(T * B, H), w_ih_t,
                         preferred_element_type=jnp.float32)             # (T*B,4H)
    gates_x = (gates_flat.reshape(T, B, 4 * H)
               + (b_ih + b_hh).astype(jnp.float32))                      # (T,B,4H) f32
    # Stream gates in the compute dtype (halves the HBM stream on TPU).
    gates_x = gates_x.astype(compute_dtype)
    gates_x = jnp.pad(gates_x, ((0, 0), (0, Bp - B), (0, 0)))            # (T,Bp,4H)

    w_hh_t = w_hh.T.astype(compute_dtype)                                # (H,4H)

    if hidden_states is None:
        h0 = jnp.zeros((Bp, H), jnp.float32)
        c0 = jnp.zeros((Bp, H), jnp.float32)
    else:
        h0 = jnp.pad(hidden_states[0].reshape(B, H).astype(jnp.float32),
                     ((0, Bp - B), (0, 0)))
        c0 = jnp.pad(hidden_states[1].reshape(B, H).astype(jnp.float32),
                     ((0, Bp - B), (0, 0)))

    # ---------------- VMEM budget ------------------------------------------
    # Resident W_hh (single-buffered) + double-buffered gx/hseq blocks +
    # states/scratch, headroom, capped below v7x's 64 MiB per TensorCore.
    w_hh_bytes = H * 4 * H * bpe
    gx_block_bytes = 2 * tc * Bb * 4 * H * bpe
    hseq_block_bytes = 2 * tc * Bb * H * bpe
    state_bytes = 8 * Bb * H * 4 + Bb * H * (bpe + 4)
    est = w_hh_bytes + gx_block_bytes + hseq_block_bytes + state_bytes
    vmem_bytes = max(32 * 1024 * 1024,
                     min(int(1.25 * est) + (8 << 20), 56 * 1024 * 1024))

    # ---------------- serial recurrence: the Pallas kernel ------------------
    h_seq, h_n, c_n = pl.pallas_call(
        lstm_recurrence_kernel,
        out_shape=(
            jax.ShapeDtypeStruct((T, Bp, H), compute_dtype),   # hidden sequence
            jax.ShapeDtypeStruct((Bp, H), jnp.float32),        # h_n
            jax.ShapeDtypeStruct((Bp, H), jnp.float32),        # c_n
        ),
        grid_spec=pltpu.PrefetchScalarGridSpec(
            num_scalar_prefetch=0,
            grid=(Bp // Bb, T // tc),       # (batch blocks, time chunks)
            in_specs=[
                # Tc timesteps of precomputed input gates per grid step.
                pl.BlockSpec((tc, Bb, 4 * H), lambda b, s: (s, b, 0)),
                # Constant-index (resident) operands: single-buffer them.
                pl.BlockSpec((H, 4 * H), lambda b, s: (0, 0),
                             pipeline_mode=pl.Buffered(1)),
                pl.BlockSpec((Bb, H), lambda b, s: (b, 0),
                             pipeline_mode=pl.Buffered(1)),
                pl.BlockSpec((Bb, H), lambda b, s: (b, 0),
                             pipeline_mode=pl.Buffered(1)),
            ],
            out_specs=(
                pl.BlockSpec((tc, Bb, H), lambda b, s: (s, b, 0)),
                pl.BlockSpec((Bb, H), lambda b, s: (b, 0)),   # final h
                pl.BlockSpec((Bb, H), lambda b, s: (b, 0)),   # final c
            ),
            scratch_shapes=[
                pltpu.VMEM((Bb, H), compute_dtype),   # h carry
                pltpu.VMEM((Bb, H), jnp.float32),     # c carry
            ],
        ),
        compiler_params=pltpu.CompilerParams(
            # Batch blocks are independent (megacore on v7x); the time axis
            # carries the recurrence and MUST stay sequential.
            dimension_semantics=("parallel", "arbitrary"),
            vmem_limit_bytes=vmem_bytes),
    )(gates_x, w_hh_t, h0, c0)

    # ---------------- deferred FC: one flat GEMM, then layout ---------------
    w_fc_t = w_fc.T.astype(compute_dtype)                                # (H,D)
    out_flat = jnp.dot(h_seq.reshape(T * Bp, H), w_fc_t,
                       preferred_element_type=jnp.float32)               # (T*Bp,D)
    output = (out_flat.reshape(T, Bp, D).transpose(1, 0, 2)[:B]
              + b_fc.astype(jnp.float32))                                # (B,T,D)

    # PyTorch LSTM returns (h_n, c_n), each (num_layers, B, H).
    return output, (h_n[:B][None, :, :], c_n[:B][None, :, :])


def _reference_forward(inputs, emb_table, w_ih, w_hh, b_ih, b_hh, w_fc, b_fc):
    """Pure-JAX f32 reference (lax.scan LSTM) for correctness check."""
    B, T = inputs.shape
    H = emb_table.shape[1]
    x = jnp.take(emb_table, inputs, axis=0)                     # (B, T, H)
    x = jnp.transpose(x, (1, 0, 2))                             # (T, B, H)

    def step(carry, x_t):
        h, c = carry
        gates = (x_t @ w_ih.T + b_ih + h @ w_hh.T + b_hh)
        i = jax.nn.sigmoid(gates[:, 0:H])
        f = jax.nn.sigmoid(gates[:, H:2 * H])
        g = jnp.tanh(gates[:, 2 * H:3 * H])
        o = jax.nn.sigmoid(gates[:, 3 * H:4 * H])
        c_new = f * c + i * g
        h_new = o * jnp.tanh(c_new)
        return (h_new, c_new), h_new

    h0 = jnp.zeros((B, H), jnp.float32)
    c0 = jnp.zeros((B, H), jnp.float32)
    (h_n, c_n), hs = jax.lax.scan(step, (h0, c0), x)
    out = jnp.transpose(hs, (1, 0, 2)) @ w_fc.T + b_fc
    return out, (h_n[None], c_n[None])


if __name__ == "__main__":
    # Small shapes consistent with the module's forward:
    #   inputs (batch, seq) int tokens; hidden_dim H; output_dim D.
    B, T = 2, 8
    NUM_VOCABS = 32
    H = 32            # hidden_dim (scaled down from 2048)
    D = 16            # output_dim (scaled down from 640)

    key = jax.random.PRNGKey(0)
    ks = jax.random.split(key, 8)
    scale = 1.0 / jnp.sqrt(H)

    emb_table = jax.random.normal(ks[0], (NUM_VOCABS, H), jnp.float32)
    w_ih = jax.random.uniform(ks[1], (4 * H, H), jnp.float32, -scale, scale)
    w_hh = jax.random.uniform(ks[2], (4 * H, H), jnp.float32, -scale, scale)
    b_ih = jax.random.uniform(ks[3], (4 * H,), jnp.float32, -scale, scale)
    b_hh = jax.random.uniform(ks[4], (4 * H,), jnp.float32, -scale, scale)
    w_fc = jax.random.uniform(ks[5], (D, H), jnp.float32, -scale, scale)
    b_fc = jax.random.uniform(ks[6], (D,), jnp.float32, -scale, scale)

    inputs = jax.random.randint(ks[7], (B, T), 0, NUM_VOCABS, jnp.int32)

    out, (h_n, c_n) = label_encoder_forward(
        inputs, emb_table, w_ih, w_hh, b_ih, b_hh, w_fc, b_fc)
    jax.block_until_ready(out)
    jax.block_until_ready(h_n)
    jax.block_until_ready(c_n)

    ref_out, (ref_h, ref_c) = _reference_forward(
        inputs, emb_table, w_ih, w_hh, b_ih, b_hh, w_fc, b_fc)

    assert out.shape == (B, T, D)
    assert h_n.shape == (1, B, H) and c_n.shape == (1, B, H)
    # bf16 weights / f32 accumulation vs f32 reference -> slightly loosened tol.
    assert jnp.allclose(out, ref_out, atol=2e-2, rtol=2e-2)
    assert jnp.allclose(h_n, ref_h, atol=2e-2, rtol=2e-2)
    assert jnp.allclose(c_n, ref_c, atol=2e-2, rtol=2e-2)

    print("KERNEL_OK")
</pallas_src>

<mosaic_0001>
module attributes {stable_mosaic.version = 11 : i64} {
  func.func @lstm_recurrence_kernel(%arg0: i32, %arg1: i32, %arg2: memref<8x8x128xf32, #tpu.memory_space<vmem>>, %arg3: memref<32x128xf32, #tpu.memory_space<vmem>>, %arg4: memref<8x32xf32, #tpu.memory_space<vmem>>, %arg5: memref<8x32xf32, #tpu.memory_space<vmem>>, %arg6: memref<8x8x32xf32, #tpu.memory_space<vmem>>, %arg7: memref<8x32xf32, #tpu.memory_space<vmem>>, %arg8: memref<8x32xf32, #tpu.memory_space<vmem>>, %arg9: memref<8x32xf32, #tpu.memory_space<vmem>>, %arg10: memref<8x32xf32, #tpu.memory_space<vmem>>) attributes {dimension_semantics = [#tpu.dimension_semantics<parallel>, #tpu.dimension_semantics<arbitrary>], iteration_bounds = array<i64: 1, 1>, scalar_prefetch = 0 : i64, scratch_operands = 2 : i64, tpu.core_type = #tpu.core_type<tc>, window_params = [{transform_indices = @transform_0, window_bounds = array<i64: 8, 8, 128>}, {pipeline_mode = #tpu.pipeline_mode<synchronous>, transform_indices = @transform_1, window_bounds = array<i64: 32, 128>}, {pipeline_mode = #tpu.pipeline_mode<synchronous>, transform_indices = @transform_2, window_bounds = array<i64: 8, 32>}, {pipeline_mode = #tpu.pipeline_mode<synchronous>, transform_indices = @transform_3, window_bounds = array<i64: 8, 32>}, {transform_indices = @transform_4, window_bounds = array<i64: 8, 8, 32>}, {transform_indices = @transform_5, window_bounds = array<i64: 8, 32>}, {transform_indices = @transform_6, window_bounds = array<i64: 8, 32>}]} {
    %c0_i32 = arith.constant 0 : i32
    %0 = arith.cmpi eq, %arg1, %c0_i32 : i32
    %1 = arith.extui %0 : i1 to i32
    %c0_i32_0 = arith.constant 0 : i32
    %2 = arith.cmpi ne, %1, %c0_i32_0 : i32
    scf.if %2 {
      %c0_76 = arith.constant 0 : index
      %c0_77 = arith.constant 0 : index
      %283 = vector.load %arg4[%c0_76, %c0_77] : memref<8x32xf32, #tpu.memory_space<vmem>>, vector<8x32xf32>
      %c0_78 = arith.constant 0 : index
      %c0_79 = arith.constant 0 : index
      %284 = vector.load %arg9[%c0_78, %c0_79] : memref<8x32xf32, #tpu.memory_space<vmem>>, vector<8x32xf32>
      tpu.vector_store %arg9[%c0_78, %c0_79], %283 {strides = array<i32>} : memref<8x32xf32, #tpu.memory_space<vmem>>, vector<8x32xf32>,
      %c0_80 = arith.constant 0 : index
      %c0_81 = arith.constant 0 : index
      %285 = vector.load %arg5[%c0_80, %c0_81] : memref<8x32xf32, #tpu.memory_space<vmem>>, vector<8x32xf32>
      %c0_82 = arith.constant 0 : index
      %c0_83 = arith.constant 0 : index
      %286 = vector.load %arg10[%c0_82, %c0_83] : memref<8x32xf32, #tpu.memory_space<vmem>>, vector<8x32xf32>
      tpu.vector_store %arg10[%c0_82, %c0_83], %285 {strides = array<i32>} : memref<8x32xf32, #tpu.memory_space<vmem>>, vector<8x32xf32>,
    } else {
    }
    %c0 = arith.constant 0 : index
    %c0_1 = arith.constant 0 : index
    %3 = vector.load %arg3[%c0, %c0_1] : memref<32x128xf32, #tpu.memory_space<vmem>>, vector<32x128xf32>
    %c0_2 = arith.constant 0 : index
    %c0_3 = arith.constant 0 : index
    %4 = vector.load %arg9[%c0_2, %c0_3] : memref<8x32xf32, #tpu.memory_space<vmem>>, vector<8x32xf32>
    %c0_4 = arith.constant 0 : index
    %c0_5 = arith.constant 0 : index
    %5 = vector.load %arg10[%c0_4, %c0_5] : memref<8x32xf32, #tpu.memory_space<vmem>>, vector<8x32xf32>
    %c0_i32_6 = arith.constant 0 : i32
    %6 = arith.index_cast %c0_i32_6 : i32 to index
    %c0_7 = arith.constant 0 : index
    %c0_8 = arith.constant 0 : index
    %7 = vector.load %arg2[%6, %c0_7, %c0_8] : memref<8x8x128xf32, #tpu.memory_space<vmem>>, vector<1x8x128xf32>
    %8 = vector.shape_cast %7 : vector<1x8x128xf32> to vector<8x128xf32>
    %cst = arith.constant dense<0.000000e+00> : vector<8x128xf32>
    %9 = tpu.matmul %4, %3, %cst {dimension_numbers = #tpu.dot_dimension_numbers<[1], [0], [0], [1], [0, 0, 1, 1], [], []>} : vector<8x32xf32>, vector<32x128xf32>, vector<8x128xf32> -> vector<8x128xf32>
    %10 = arith.addf %8, %9 : vector<8x128xf32>
    %11 = vector.extract_strided_slice %10 {offsets = [0, 0], sizes = [8, 32], strides = [1, 1]} : vector<8x128xf32> to vector<8x32xf32>
    %12 = arith.negf %11 : vector<8x32xf32>
    %13 = math.exp %12 : vector<8x32xf32>
    %cst_9 = arith.constant 1.000000e+00 : f32
    %14 = vector.broadcast %cst_9 : f32 to vector<8x32xf32>
    %15 = arith.addf %14, %13 : vector<8x32xf32>
    %16 = arith.divf %14, %15 : vector<8x32xf32>
    %17 = vector.extract_strided_slice %10 {offsets = [0, 32], sizes = [8, 32], strides = [1, 1]} : vector<8x128xf32> to vector<8x32xf32>
    %18 = arith.negf %17 : vector<8x32xf32>
    %19 = math.exp %18 : vector<8x32xf32>
    %cst_10 = arith.constant 1.000000e+00 : f32
    %20 = vector.broadcast %cst_10 : f32 to vector<8x32xf32>
    %21 = arith.addf %20, %19 : vector<8x32xf32>
    %22 = arith.divf %20, %21 : vector<8x32xf32>
    %23 = vector.extract_strided_slice %10 {offsets = [0, 64], sizes = [8, 32], strides = [1, 1]} : vector<8x128xf32> to vector<8x32xf32>
    %24 = math.tanh %23 : vector<8x32xf32>
    %25 = vector.extract_strided_slice %10 {offsets = [0, 96], sizes = [8, 32], strides = [1, 1]} : vector<8x128xf32> to vector<8x32xf32>
    %26 = arith.negf %25 : vector<8x32xf32>
    %27 = math.exp %26 : vector<8x32xf32>
    %cst_11 = arith.constant 1.000000e+00 : f32
    %28 = vector.broadcast %cst_11 : f32 to vector<8x32xf32>
    %29 = arith.addf %28, %27 : vector<8x32xf32>
    %30 = arith.divf %28, %29 : vector<8x32xf32>
    %31 = arith.mulf %22, %5 : vector<8x32xf32>
    %32 = arith.mulf %16, %24 : vector<8x32xf32>
    %33 = arith.addf %31, %32 : vector<8x32xf32>
    %34 = math.tanh %33 : vector<8x32xf32>
    %35 = arith.mulf %30, %34 : vector<8x32xf32>
    %36 = arith.index_cast %c0_i32_6 : i32 to index
    %c0_12 = arith.constant 0 : index
    %c0_13 = arith.constant 0 : index
    %37 = vector.load %arg6[%36, %c0_12, %c0_13] : memref<8x8x32xf32, #tpu.memory_space<vmem>>, vector<1x8x32xf32>
    %38 = vector.shape_cast %37 : vector<1x8x32xf32> to vector<8x32xf32>
    %39 = vector.shape_cast %35 : vector<8x32xf32> to vector<1x8x32xf32>
    tpu.vector_store %arg6[%36, %c0_12, %c0_13], %39 {strides = array<i32>} : memref<8x8x32xf32, #tpu.memory_space<vmem>>, vector<1x8x32xf32>,
    %c1_i32 = arith.constant 1 : i32
    %40 = arith.index_cast %c1_i32 : i32 to index
    %c0_14 = arith.constant 0 : index
    %c0_15 = arith.constant 0 : index
    %41 = vector.load %arg2[%40, %c0_14, %c0_15] : memref<8x8x128xf32, #tpu.memory_space<vmem>>, vector<1x8x128xf32>
    %42 = vector.shape_cast %41 : vector<1x8x128xf32> to vector<8x128xf32>
    %cst_16 = arith.constant dense<0.000000e+00> : vector<8x128xf32>
    %43 = tpu.matmul %35, %3, %cst_16 {dimension_numbers = #tpu.dot_dimension_numbers<[1], [0], [0], [1], [0, 0, 1, 1], [], []>} : vector<8x32xf32>, vector<32x128xf32>, vector<8x128xf32> -> vector<8x128xf32>
    %44 = arith.addf %42, %43 : vector<8x128xf32>
    %45 = vector.extract_strided_slice %44 {offsets = [0, 0], sizes = [8, 32], strides = [1, 1]} : vector<8x128xf32> to vector<8x32xf32>
    %46 = arith.negf %45 : vector<8x32xf32>
    %47 = math.exp %46 : vector<8x32xf32>
    %cst_17 = arith.constant 1.000000e+00 : f32
    %48 = vector.broadcast %cst_17 : f32 to vector<8x32xf32>
    %49 = arith.addf %48, %47 : vector<8x32xf32>
    %50 = arith.divf %48, %49 : vector<8x32xf32>
    %51 = vector.extract_strided_slice %44 {offsets = [0, 32], sizes = [8, 32], strides = [1, 1]} : vector<8x128xf32> to vector<8x32xf32>
    %52 = arith.negf %51 : vector<8x32xf32>
    %53 = math.exp %52 : vector<8x32xf32>
    %cst_18 = arith.constant 1.000000e+00 : f32
    %54 = vector.broadcast %cst_18 : f32 to vector<8x32xf32>
    %55 = arith.addf %54, %53 : vector<8x32xf32>
    %56 = arith.divf %54, %55 : vector<8x32xf32>
    %57 = vector.extract_strided_slice %44 {offsets = [0, 64], sizes = [8, 32], strides = [1, 1]} : vector<8x128xf32> to vector<8x32xf32>
    %58 = math.tanh %57 : vector<8x32xf32>
    %59 = vector.extract_strided_slice %44 {offsets = [0, 96], sizes = [8, 32], strides = [1, 1]} : vector<8x128xf32> to vector<8x32xf32>
    %60 = arith.negf %59 : vector<8x32xf32>
    %61 = math.exp %60 : vector<8x32xf32>
    %cst_19 = arith.constant 1.000000e+00 : f32
    %62 = vector.broadcast %cst_19 : f32 to vector<8x32xf32>
    %63 = arith.addf %62, %61 : vector<8x32xf32>
    %64 = arith.divf %62, %63 : vector<8x32xf32>
    %65 = arith.mulf %56, %33 : vector<8x32xf32>
    %66 = arith.mulf %50, %58 : vector<8x32xf32>
    %67 = arith.addf %65, %66 : vector<8x32xf32>
    %68 = math.tanh %67 : vector<8x32xf32>
    %69 = arith.mulf %64, %68 : vector<8x32xf32>
    %70 = arith.index_cast %c1_i32 : i32 to index
    %c0_20 = arith.constant 0 : index
    %c0_21 = arith.constant 0 : index
    %71 = vector.load %arg6[%70, %c0_20, %c0_21] : memref<8x8x32xf32, #tpu.memory_space<vmem>>, vector<1x8x32xf32>
    %72 = vector.shape_cast %71 : vector<1x8x32xf32> to vector<8x32xf32>
    %73 = vector.shape_cast %69 : vector<8x32xf32> to vector<1x8x32xf32>
    tpu.vector_store %arg6[%70, %c0_20, %c0_21], %73 {strides = array<i32>} : memref<8x8x32xf32, #tpu.memory_space<vmem>>, vector<1x8x32xf32>,
    %c2_i32 = arith.constant 2 : i32
    %74 = arith.index_cast %c2_i32 : i32 to index
    %c0_22 = arith.constant 0 : index
    %c0_23 = arith.constant 0 : index
    %75 = vector.load %arg2[%74, %c0_22, %c0_23] : memref<8x8x128xf32, #tpu.memory_space<vmem>>, vector<1x8x128xf32>
    %76 = vector.shape_cast %75 : vector<1x8x128xf32> to vector<8x128xf32>
    %cst_24 = arith.constant dense<0.000000e+00> : vector<8x128xf32>
    %77 = tpu.matmul %69, %3, %cst_24 {dimension_numbers = #tpu.dot_dimension_numbers<[1], [0], [0], [1], [0, 0, 1, 1], [], []>} : vector<8x32xf32>, vector<32x128xf32>, vector<8x128xf32> -> vector<8x128xf32>
    %78 = arith.addf %76, %77 : vector<8x128xf32>
    %79 = vector.extract_strided_slice %78 {offsets = [0, 0], sizes = [8, 32], strides = [1, 1]} : vector<8x128xf32> to vector<8x32xf32>
    %80 = arith.negf %79 : vector<8x32xf32>
    %81 = math.exp %80 : vector<8x32xf32>
    %cst_25 = arith.constant 1.000000e+00 : f32
    %82 = vector.broadcast %cst_25 : f32 to vector<8x32xf32>
    %83 = arith.addf %82, %81 : vector<8x32xf32>
    %84 = arith.divf %82, %83 : vector<8x32xf32>
    %85 = vector.extract_strided_slice %78 {offsets = [0, 32], sizes = [8, 32], strides = [1, 1]} : vector<8x128xf32> to vector<8x32xf32>
    %86 = arith.negf %85 : vector<8x32xf32>
    %87 = math.exp %86 : vector<8x32xf32>
    %cst_26 = arith.constant 1.000000e+00 : f32
    %88 = vector.broadcast %cst_26 : f32 to vector<8x32xf32>
    %89 = arith.addf %88, %87 : vector<8x32xf32>
    %90 = arith.divf %88, %89 : vector<8x32xf32>
    %91 = vector.extract_strided_slice %78 {offsets = [0, 64], sizes = [8, 32], strides = [1, 1]} : vector<8x128xf32> to vector<8x32xf32>
    %92 = math.tanh %91 : vector<8x32xf32>
    %93 = vector.extract_strided_slice %78 {offsets = [0, 96], sizes = [8, 32], strides = [1, 1]} : vector<8x128xf32> to vector<8x32xf32>
    %94 = arith.negf %93 : vector<8x32xf32>
    %95 = math.exp %94 : vector<8x32xf32>
    %cst_27 = arith.constant 1.000000e+00 : f32
    %96 = vector.broadcast %cst_27 : f32 to vector<8x32xf32>
    %97 = arith.addf %96, %95 : vector<8x32xf32>
    %98 = arith.divf %96, %97 : vector<8x32xf32>
    %99 = arith.mulf %90, %67 : vector<8x32xf32>
    %100 = arith.mulf %84, %92 : vector<8x32xf32>
    %101 = arith.addf %99, %100 : vector<8x32xf32>
    %102 = math.tanh %101 : vector<8x32xf32>
    %103 = arith.mulf %98, %102 : vector<8x32xf32>
    %104 = arith.index_cast %c2_i32 : i32 to index
    %c0_28 = arith.constant 0 : index
    %c0_29 = arith.constant 0 : index
    %105 = vector.load %arg6[%104, %c0_28, %c0_29] : memref<8x8x32xf32, #tpu.memory_space<vmem>>, vector<1x8x32xf32>
    %106 = vector.shape_cast %105 : vector<1x8x32xf32> to vector<8x32xf32>
    %107 = vector.shape_cast %103 : vector<8x32xf32> to vector<1x8x32xf32>
    tpu.vector_store %arg6[%104, %c0_28, %c0_29], %107 {strides = array<i32>} : memref<8x8x32xf32, #tpu.memory_space<vmem>>, vector<1x8x32xf32>,
    %c3_i32 = arith.constant 3 : i32
    %108 = arith.index_cast %c3_i32 : i32 to index
    %c0_30 = arith.constant 0 : index
    %c0_31 = arith.constant 0 : index
    %109 = vector.load %arg2[%108, %c0_30, %c0_31] : memref<8x8x128xf32, #tpu.memory_space<vmem>>, vector<1x8x128xf32>
    %110 = vector.shape_cast %109 : vector<1x8x128xf32> to vector<8x128xf32>
    %cst_32 = arith.constant dense<0.000000e+00> : vector<8x128xf32>
    %111 = tpu.matmul %103, %3, %cst_32 {dimension_numbers = #tpu.dot_dimension_numbers<[1], [0], [0], [1], [0, 0, 1, 1], [], []>} : vector<8x32xf32>, vector<32x128xf32>, vector<8x128xf32> -> vector<8x128xf32>
    %112 = arith.addf %110, %111 : vector<8x128xf32>
    %113 = vector.extract_strided_slice %112 {offsets = [0, 0], sizes = [8, 32], strides = [1, 1]} : vector<8x128xf32> to vector<8x32xf32>
    %114 = arith.negf %113 : vector<8x32xf32>
    %115 = math.exp %114 : vector<8x32xf32>
    %cst_33 = arith.constant 1.000000e+00 : f32
    %116 = vector.broadcast %cst_33 : f32 to vector<8x32xf32>
    %117 = arith.addf %116, %115 : vector<8x32xf32>
    %118 = arith.divf %116, %117 : vector<8x32xf32>
    %119 = vector.extract_strided_slice %112 {offsets = [0, 32], sizes = [8, 32], strides = [1, 1]} : vector<8x128xf32> to vector<8x32xf32>
    %120 = arith.negf %119 : vector<8x32xf32>
    %121 = math.exp %120 : vector<8x32xf32>
    %cst_34 = arith.constant 1.000000e+00 : f32
    %122 = vector.broadcast %cst_34 : f32 to vector<8x32xf32>
    %123 = arith.addf %122, %121 : vector<8x32xf32>
    %124 = arith.divf %122, %123 : vector<8x32xf32>
    %125 = vector.extract_strided_slice %112 {offsets = [0, 64], sizes = [8, 32], strides = [1, 1]} : vector<8x128xf32> to vector<8x32xf32>
    %126 = math.tanh %125 : vector<8x32xf32>
    %127 = vector.extract_strided_slice %112 {offsets = [0, 96], sizes = [8, 32], strides = [1, 1]} : vector<8x128xf32> to vector<8x32xf32>
    %128 = arith.negf %127 : vector<8x32xf32>
    %129 = math.exp %128 : vector<8x32xf32>
    %cst_35 = arith.constant 1.000000e+00 : f32
    %130 = vector.broadcast %cst_35 : f32 to vector<8x32xf32>
    %131 = arith.addf %130, %129 : vector<8x32xf32>
    %132 = arith.divf %130, %131 : vector<8x32xf32>
    %133 = arith.mulf %124, %101 : vector<8x32xf32>
    %134 = arith.mulf %118, %126 : vector<8x32xf32>
    %135 = arith.addf %133, %134 : vector<8x32xf32>
    %136 = math.tanh %135 : vector<8x32xf32>
    %137 = arith.mulf %132, %136 : vector<8x32xf32>
    %138 = arith.index_cast %c3_i32 : i32 to index
    %c0_36 = arith.constant 0 : index
    %c0_37 = arith.constant 0 : index
    %139 = vector.load %arg6[%138, %c0_36, %c0_37] : memref<8x8x32xf32, #tpu.memory_space<vmem>>, vector<1x8x32xf32>
    %140 = vector.shape_cast %139 : vector<1x8x32xf32> to vector<8x32xf32>
    %141 = vector.shape_cast %137 : vector<8x32xf32> to vector<1x8x32xf32>
    tpu.vector_store %arg6[%138, %c0_36, %c0_37], %141 {strides = array<i32>} : memref<8x8x32xf32, #tpu.memory_space<vmem>>, vector<1x8x32xf32>,
    %c4_i32 = arith.constant 4 : i32
    %142 = arith.index_cast %c4_i32 : i32 to index
    %c0_38 = arith.constant 0 : index
    %c0_39 = arith.constant 0 : index
    %143 = vector.load %arg2[%142, %c0_38, %c0_39] : memref<8x8x128xf32, #tpu.memory_space<vmem>>, vector<1x8x128xf32>
    %144 = vector.shape_cast %143 : vector<1x8x128xf32> to vector<8x128xf32>
    %cst_40 = arith.constant dense<0.000000e+00> : vector<8x128xf32>
    %145 = tpu.matmul %137, %3, %cst_40 {dimension_numbers = #tpu.dot_dimension_numbers<[1], [0], [0], [1], [0, 0, 1, 1], [], []>} : vector<8x32xf32>, vector<32x128xf32>, vector<8x128xf32> -> vector<8x128xf32>
    %146 = arith.addf %144, %145 : vector<8x128xf32>
    %147 = vector.extract_strided_slice %146 {offsets = [0, 0], sizes = [8, 32], strides = [1, 1]} : vector<8x128xf32> to vector<8x32xf32>
    %148 = arith.negf %147 : vector<8x32xf32>
    %149 = math.exp %148 : vector<8x32xf32>
    %cst_41 = arith.constant 1.000000e+00 : f32
    %150 = vector.broadcast %cst_41 : f32 to vector<8x32xf32>
    %151 = arith.addf %150, %149 : vector<8x32xf32>
    %152 = arith.divf %150, %151 : vector<8x32xf32>
    %153 = vector.extract_strided_slice %146 {offsets = [0, 32], sizes = [8, 32], strides = [1, 1]} : vector<8x128xf32> to vector<8x32xf32>
    %154 = arith.negf %153 : vector<8x32xf32>
    %155 = math.exp %154 : vector<8x32xf32>
    %cst_42 = arith.constant 1.000000e+00 : f32
    %156 = vector.broadcast %cst_42 : f32 to vector<8x32xf32>
    %157 = arith.addf %156, %155 : vector<8x32xf32>
    %158 = arith.divf %156, %157 : vector<8x32xf32>
    %159 = vector.extract_strided_slice %146 {offsets = [0, 64], sizes = [8, 32], strides = [1, 1]} : vector<8x128xf32> to vector<8x32xf32>
    %160 = math.tanh %159 : vector<8x32xf32>
    %161 = vector.extract_strided_slice %146 {offsets = [0, 96], sizes = [8, 32], strides = [1, 1]} : vector<8x128xf32> to vector<8x32xf32>
    %162 = arith.negf %161 : vector<8x32xf32>
    %163 = math.exp %162 : vector<8x32xf32>
    %cst_43 = arith.constant 1.000000e+00 : f32
    %164 = vector.broadcast %cst_43 : f32 to vector<8x32xf32>
    %165 = arith.addf %164, %163 : vector<8x32xf32>
    %166 = arith.divf %164, %165 : vector<8x32xf32>
    %167 = arith.mulf %158, %135 : vector<8x32xf32>
    %168 = arith.mulf %152, %160 : vector<8x32xf32>
    %169 = arith.addf %167, %168 : vector<8x32xf32>
    %170 = math.tanh %169 : vector<8x32xf32>
    %171 = arith.mulf %166, %170 : vector<8x32xf32>
    %172 = arith.index_cast %c4_i32 : i32 to index
    %c0_44 = arith.constant 0 : index
    %c0_45 = arith.constant 0 : index
    %173 = vector.load %arg6[%172, %c0_44, %c0_45] : memref<8x8x32xf32, #tpu.memory_space<vmem>>, vector<1x8x32xf32>
    %174 = vector.shape_cast %173 : vector<1x8x32xf32> to vector<8x32xf32>
    %175 = vector.shape_cast %171 : vector<8x32xf32> to vector<1x8x32xf32>
    tpu.vector_store %arg6[%172, %c0_44, %c0_45], %175 {strides = array<i32>} : memref<8x8x32xf32, #tpu.memory_space<vmem>>, vector<1x8x32xf32>,
    %c5_i32 = arith.constant 5 : i32
    %176 = arith.index_cast %c5_i32 : i32 to index
    %c0_46 = arith.constant 0 : index
    %c0_47 = arith.constant 0 : index
    %177 = vector.load %arg2[%176, %c0_46, %c0_47] : memref<8x8x128xf32, #tpu.memory_space<vmem>>, vector<1x8x128xf32>
    %178 = vector.shape_cast %177 : vector<1x8x128xf32> to vector<8x128xf32>
    %cst_48 = arith.constant dense<0.000000e+00> : vector<8x128xf32>
    %179 = tpu.matmul %171, %3, %cst_48 {dimension_numbers = #tpu.dot_dimension_numbers<[1], [0], [0], [1], [0, 0, 1, 1], [], []>} : vector<8x32xf32>, vector<32x128xf32>, vector<8x128xf32> -> vector<8x128xf32>
    %180 = arith.addf %178, %179 : vector<8x128xf32>
    %181 = vector.extract_strided_slice %180 {offsets = [0, 0], sizes = [8, 32], strides = [1, 1]} : vector<8x128xf32> to vector<8x32xf32>
    %182 = arith.negf %181 : vector<8x32xf32>
    %183 = math.exp %182 : vector<8x32xf32>
    %cst_49 = arith.constant 1.000000e+00 : f32
    %184 = vector.broadcast %cst_49 : f32 to vector<8x32xf32>
    %185 = arith.addf %184, %183 : vector<8x32xf32>
    %186 = arith.divf %184, %185 : vector<8x32xf32>
    %187 = vector.extract_strided_slice %180 {offsets = [0, 32], sizes = [8, 32], strides = [1, 1]} : vector<8x128xf32> to vector<8x32xf32>
    %188 = arith.negf %187 : vector<8x32xf32>
    %189 = math.exp %188 : vector<8x32xf32>
    %cst_50 = arith.constant 1.000000e+00 : f32
    %190 = vector.broadcast %cst_50 : f32 to vector<8x32xf32>
    %191 = arith.addf %190, %189 : vector<8x32xf32>
    %192 = arith.divf %190, %191 : vector<8x32xf32>
    %193 = vector.extract_strided_slice %180 {offsets = [0, 64], sizes = [8, 32], strides = [1, 1]} : vector<8x128xf32> to vector<8x32xf32>
    %194 = math.tanh %193 : vector<8x32xf32>
    %195 = vector.extract_strided_slice %180 {offsets = [0, 96], sizes = [8, 32], strides = [1, 1]} : vector<8x128xf32> to vector<8x32xf32>
    %196 = arith.negf %195 : vector<8x32xf32>
    %197 = math.exp %196 : vector<8x32xf32>
    %cst_51 = arith.constant 1.000000e+00 : f32
    %198 = vector.broadcast %cst_51 : f32 to vector<8x32xf32>
    %199 = arith.addf %198, %197 : vector<8x32xf32>
    %200 = arith.divf %198, %199 : vector<8x32xf32>
    %201 = arith.mulf %192, %169 : vector<8x32xf32>
    %202 = arith.mulf %186, %194 : vector<8x32xf32>
    %203 = arith.addf %201, %202 : vector<8x32xf32>
    %204 = math.tanh %203 : vector<8x32xf32>
    %205 = arith.mulf %200, %204 : vector<8x32xf32>
    %206 = arith.index_cast %c5_i32 : i32 to index
    %c0_52 = arith.constant 0 : index
    %c0_53 = arith.constant 0 : index
    %207 = vector.load %arg6[%206, %c0_52, %c0_53] : memref<8x8x32xf32, #tpu.memory_space<vmem>>, vector<1x8x32xf32>
    %208 = vector.shape_cast %207 : vector<1x8x32xf32> to vector<8x32xf32>
    %209 = vector.shape_cast %205 : vector<8x32xf32> to vector<1x8x32xf32>
    tpu.vector_store %arg6[%206, %c0_52, %c0_53], %209 {strides = array<i32>} : memref<8x8x32xf32, #tpu.memory_space<vmem>>, vector<1x8x32xf32>,
    %c6_i32 = arith.constant 6 : i32
    %210 = arith.index_cast %c6_i32 : i32 to index
    %c0_54 = arith.constant 0 : index
    %c0_55 = arith.constant 0 : index
    %211 = vector.load %arg2[%210, %c0_54, %c0_55] : memref<8x8x128xf32, #tpu.memory_space<vmem>>, vector<1x8x128xf32>
    %212 = vector.shape_cast %211 : vector<1x8x128xf32> to vector<8x128xf32>
    %cst_56 = arith.constant dense<0.000000e+00> : vector<8x128xf32>
    %213 = tpu.matmul %205, %3, %cst_56 {dimension_numbers = #tpu.dot_dimension_numbers<[1], [0], [0], [1], [0, 0, 1, 1], [], []>} : vector<8x32xf32>, vector<32x128xf32>, vector<8x128xf32> -> vector<8x128xf32>
    %214 = arith.addf %212, %213 : vector<8x128xf32>
    %215 = vector.extract_strided_slice %214 {offsets = [0, 0], sizes = [8, 32], strides = [1, 1]} : vector<8x128xf32> to vector<8x32xf32>
    %216 = arith.negf %215 : vector<8x32xf32>
    %217 = math.exp %216 : vector<8x32xf32>
    %cst_57 = arith.constant 1.000000e+00 : f32
    %218 = vector.broadcast %cst_57 : f32 to vector<8x32xf32>
    %219 = arith.addf %218, %217 : vector<8x32xf32>
    %220 = arith.divf %218, %219 : vector<8x32xf32>
    %221 = vector.extract_strided_slice %214 {offsets = [0, 32], sizes = [8, 32], strides = [1, 1]} : vector<8x128xf32> to vector<8x32xf32>
    %222 = arith.negf %221 : vector<8x32xf32>
    %223 = math.exp %222 : vector<8x32xf32>
    %cst_58 = arith.constant 1.000000e+00 : f32
    %224 = vector.broadcast %cst_58 : f32 to vector<8x32xf32>
    %225 = arith.addf %224, %223 : vector<8x32xf32>
    %226 = arith.divf %224, %225 : vector<8x32xf32>
    %227 = vector.extract_strided_slice %214 {offsets = [0, 64], sizes = [8, 32], strides = [1, 1]} : vector<8x128xf32> to vector<8x32xf32>
    %228 = math.tanh %227 : vector<8x32xf32>
    %229 = vector.extract_strided_slice %214 {offsets = [0, 96], sizes = [8, 32], strides = [1, 1]} : vector<8x128xf32> to vector<8x32xf32>
    %230 = arith.negf %229 : vector<8x32xf32>
    %231 = math.exp %230 : vector<8x32xf32>
    %cst_59 = arith.constant 1.000000e+00 : f32
    %232 = vector.broadcast %cst_59 : f32 to vector<8x32xf32>
    %233 = arith.addf %232, %231 : vector<8x32xf32>
    %234 = arith.divf %232, %233 : vector<8x32xf32>
    %235 = arith.mulf %226, %203 : vector<8x32xf32>
    %236 = arith.mulf %220, %228 : vector<8x32xf32>
    %237 = arith.addf %235, %236 : vector<8x32xf32>
    %238 = math.tanh %237 : vector<8x32xf32>
    %239 = arith.mulf %234, %238 : vector<8x32xf32>
    %240 = arith.index_cast %c6_i32 : i32 to index
    %c0_60 = arith.constant 0 : index
    %c0_61 = arith.constant 0 : index
    %241 = vector.load %arg6[%240, %c0_60, %c0_61] : memref<8x8x32xf32, #tpu.memory_space<vmem>>, vector<1x8x32xf32>
    %242 = vector.shape_cast %241 : vector<1x8x32xf32> to vector<8x32xf32>
    %243 = vector.shape_cast %239 : vector<8x32xf32> to vector<1x8x32xf32>
    tpu.vector_store %arg6[%240, %c0_60, %c0_61], %243 {strides = array<i32>} : memref<8x8x32xf32, #tpu.memory_space<vmem>>, vector<1x8x32xf32>,
    %c7_i32 = arith.constant 7 : i32
    %244 = arith.index_cast %c7_i32 : i32 to index
    %c0_62 = arith.constant 0 : index
    %c0_63 = arith.constant 0 : index
    %245 = vector.load %arg2[%244, %c0_62, %c0_63] : memref<8x8x128xf32, #tpu.memory_space<vmem>>, vector<1x8x128xf32>
    %246 = vector.shape_cast %245 : vector<1x8x128xf32> to vector<8x128xf32>
    %cst_64 = arith.constant dense<0.000000e+00> : vector<8x128xf32>
    %247 = tpu.matmul %239, %3, %cst_64 {dimension_numbers = #tpu.dot_dimension_numbers<[1], [0], [0], [1], [0, 0, 1, 1], [], []>} : vector<8x32xf32>, vector<32x128xf32>, vector<8x128xf32> -> vector<8x128xf32>
    %248 = arith.addf %246, %247 : vector<8x128xf32>
    %249 = vector.extract_strided_slice %248 {offsets = [0, 0], sizes = [8, 32], strides = [1, 1]} : vector<8x128xf32> to vector<8x32xf32>
    %250 = arith.negf %249 : vector<8x32xf32>
    %251 = math.exp %250 : vector<8x32xf32>
    %cst_65 = arith.constant 1.000000e+00 : f32
    %252 = vector.broadcast %cst_65 : f32 to vector<8x32xf32>
    %253 = arith.addf %252, %251 : vector<8x32xf32>
    %254 = arith.divf %252, %253 : vector<8x32xf32>
    %255 = vector.extract_strided_slice %248 {offsets = [0, 32], sizes = [8, 32], strides = [1, 1]} : vector<8x128xf32> to vector<8x32xf32>
    %256 = arith.negf %255 : vector<8x32xf32>
    %257 = math.exp %256 : vector<8x32xf32>
    %cst_66 = arith.constant 1.000000e+00 : f32
    %258 = vector.broadcast %cst_66 : f32 to vector<8x32xf32>
    %259 = arith.addf %258, %257 : vector<8x32xf32>
    %260 = arith.divf %258, %259 : vector<8x32xf32>
    %261 = vector.extract_strided_slice %248 {offsets = [0, 64], sizes = [8, 32], strides = [1, 1]} : vector<8x128xf32> to vector<8x32xf32>
    %262 = math.tanh %261 : vector<8x32xf32>
    %263 = vector.extract_strided_slice %248 {offsets = [0, 96], sizes = [8, 32], strides = [1, 1]} : vector<8x128xf32> to vector<8x32xf32>
    %264 = arith.negf %263 : vector<8x32xf32>
    %265 = math.exp %264 : vector<8x32xf32>
    %cst_67 = arith.constant 1.000000e+00 : f32
    %266 = vector.broadcast %cst_67 : f32 to vector<8x32xf32>
    %267 = arith.addf %266, %265 : vector<8x32xf32>
    %268 = arith.divf %266, %267 : vector<8x32xf32>
    %269 = arith.mulf %260, %237 : vector<8x32xf32>
    %270 = arith.mulf %254, %262 : vector<8x32xf32>
    %271 = arith.addf %269, %270 : vector<8x32xf32>
    %272 = math.tanh %271 : vector<8x32xf32>
    %273 = arith.mulf %268, %272 : vector<8x32xf32>
    %274 = arith.index_cast %c7_i32 : i32 to index
    %c0_68 = arith.constant 0 : index
    %c0_69 = arith.constant 0 : index
    %275 = vector.load %arg6[%274, %c0_68, %c0_69] : memref<8x8x32xf32, #tpu.memory_space<vmem>>, vector<1x8x32xf32>
    %276 = vector.shape_cast %275 : vector<1x8x32xf32> to vector<8x32xf32>
    %277 = vector.shape_cast %273 : vector<8x32xf32> to vector<1x8x32xf32>
    tpu.vector_store %arg6[%274, %c0_68, %c0_69], %277 {strides = array<i32>} : memref<8x8x32xf32, #tpu.memory_space<vmem>>, vector<1x8x32xf32>,
    %c8_i32 = arith.constant 8 : i32
    %c0_70 = arith.constant 0 : index
    %c0_71 = arith.constant 0 : index
    %278 = vector.load %arg9[%c0_70, %c0_71] : memref<8x32xf32, #tpu.memory_space<vmem>>, vector<8x32xf32>
    tpu.vector_store %arg9[%c0_70, %c0_71], %273 {strides = array<i32>} : memref<8x32xf32, #tpu.memory_space<vmem>>, vector<8x32xf32>,
    %c0_72 = arith.constant 0 : index
    %c0_73 = arith.constant 0 : index
    %279 = vector.load %arg10[%c0_72, %c0_73] : memref<8x32xf32, #tpu.memory_space<vmem>>, vector<8x32xf32>
    tpu.vector_store %arg10[%c0_72, %c0_73], %271 {strides = array<i32>} : memref<8x32xf32, #tpu.memory_space<vmem>>, vector<8x32xf32>,
    %c0_i32_74 = arith.constant 0 : i32
    %280 = arith.cmpi eq, %arg1, %c0_i32_74 : i32
    %281 = arith.extui %280 : i1 to i32
    %c0_i32_75 = arith.constant 0 : i32
    %282 = arith.cmpi ne, %281, %c0_i32_75 : i32
    scf.if %282 {
      %c0_76 = arith.constant 0 : index
      %c0_77 = arith.constant 0 : index
      %283 = vector.load %arg7[%c0_76, %c0_77] : memref<8x32xf32, #tpu.memory_space<vmem>>, vector<8x32xf32>
      tpu.vector_store %arg7[%c0_76, %c0_77], %273 {strides = array<i32>} : memref<8x32xf32, #tpu.memory_space<vmem>>, vector<8x32xf32>,
      %c0_78 = arith.constant 0 : index
      %c0_79 = arith.constant 0 : index
      %284 = vector.load %arg8[%c0_78, %c0_79] : memref<8x32xf32, #tpu.memory_space<vmem>>, vector<8x32xf32>
      tpu.vector_store %arg8[%c0_78, %c0_79], %271 {strides = array<i32>} : memref<8x32xf32, #tpu.memory_space<vmem>>, vector<8x32xf32>,
    } else {
    }
    return
  }
  func.func @transform_0(%arg0: i32, %arg1: i32) -> (i32, i32, i32) {
    %c0_i32 = arith.constant 0 : i32
    %c0_i32_0 = arith.constant 0 : i32
    return %arg1, %arg0, %c0_i32 : i32, i32, i32
  }
  func.func @transform_1(%arg0: i32, %arg1: i32) -> (i32, i32) {
    %c0_i32 = arith.constant 0 : i32
    %c0_i32_0 = arith.constant 0 : i32
    %c0_i32_1 = arith.constant 0 : i32
    return %c0_i32, %c0_i32_0 : i32, i32
  }
  func.func @transform_2(%arg0: i32, %arg1: i32) -> (i32, i32) {
    %c0_i32 = arith.constant 0 : i32
    %c0_i32_0 = arith.constant 0 : i32
    return %arg0, %c0_i32 : i32, i32
  }
  func.func @transform_3(%arg0: i32, %arg1: i32) -> (i32, i32) {
    %c0_i32 = arith.constant 0 : i32
    %c0_i32_0 = arith.constant 0 : i32
    return %arg0, %c0_i32 : i32, i32
  }
  func.func @transform_4(%arg0: i32, %arg1: i32) -> (i32, i32, i32) {
    %c0_i32 = arith.constant 0 : i32
    %c0_i32_0 = arith.constant 0 : i32
    return %arg1, %arg0, %c0_i32 : i32, i32, i32
  }
  func.func @transform_5(%arg0: i32, %arg1: i32) -> (i32, i32) {
    %c0_i32 = arith.constant 0 : i32
    %c0_i32_0 = arith.constant 0 : i32
    return %arg0, %c0_i32 : i32, i32
  }
  func.func @transform_6(%arg0: i32, %arg1: i32) -> (i32, i32) {
    %c0_i32 = arith.constant 0 : i32
    %c0_i32_0 = arith.constant 0 : i32
    return %arg0, %c0_i32 : i32, i32
  }
}

</mosaic_0001>

<llo_original>
// kernel: tpu_custom_call.1
$region0: #{tpu_custom_call.1}
  #allocation0 [shape = 'u32[]', space=smem, size = 0x4, offset = 0x4, fixed_abs, tag = 'smem constant byte address 0x4 - core index']
  #allocation1 [shape = 'u32[144,128]{1,0:T(1,128)}', space=vmem, size = 0x12000, scoped, tag = 'internal scratch']
  #allocation2 [shape = 'f32[8,32]{1,0:T(8,128)}', space=vmem, size = 0x1000, scoped, tag = 'scratch operand']
  #allocation3 [shape = 'f32[8,32]{1,0:T(8,128)}', space=vmem, size = 0x1000, scoped, tag = 'scratch operand']
  %s0 = inlined_call_operand.hbm [shape: f32[8,8,128], index: 0, kind: input, shape index: {}]
  %s1 = inlined_call_operand.hbm [shape: f32[32,128], index: 1, kind: input, shape index: {}]
  %s2 = inlined_call_operand.hbm [shape: f32[8,32], index: 2, kind: input, shape index: {}]
  %s3 = inlined_call_operand.vmem [shape: f32[8,32], index: 3, kind: input, shape index: {}]
  %s4 = inlined_call_operand.hbm [shape: f32[8,8,32], index: 4, kind: output, shape index: {0}]
  %s5 = inlined_call_operand.hbm [shape: f32[8,32], index: 5, kind: output, shape index: {1}]
  %s6 = inlined_call_operand.hbm [shape: f32[8,32], index: 6, kind: output, shape index: {2}]
  %7 = xla_tuple %s4, %s5, %s6
  %s8 = sld [smem:[#allocation0]]
  $region62: #{tpu_custom_call.1} parent=0
    _
  %s10 = ssub.s32 1, %s8
  %s11 = scalar_select 0, %s10, %s8
  $region1: #{tpu_custom_call.1} parent=0
    #allocation4 [shape = 'u8[32768]{0}', space=vmem, size = 0x8000, scoped, tag = 'input window, operand 0, single buffered']
    #allocation5 [shape = 's32[1]{0}', space=sflag, size = 0x4, scoped, tag = 'scoped memory for tpu_custom_call.1']
    #allocation6 [shape = 's32[1]{0}', space=sflag, size = 0x4, scoped, tag = 'scoped memory for tpu_custom_call.1']
    #allocation7 [shape = 'u8[16384]{0}', space=vmem, size = 0x4000, scoped, tag = 'input window, operand 1, single buffered']
    #allocation8 [shape = 's32[1]{0}', space=sflag, size = 0x4, scoped, tag = 'scoped memory for tpu_custom_call.1']
    #allocation9 [shape = 'u8[4096]{0}', space=vmem, size = 0x1000, scoped, tag = 'input window, operand 2, single buffered']
    #allocation10 [shape = 'u8[32768]{0}', space=vmem, size = 0x8000, scoped, tag = 'output window, operand 0, single buffered']
    #allocation11 [shape = 'u8[4096]{0}', space=vmem, size = 0x1000, scoped, tag = 'output window, operand 1, single buffered']
    #allocation12 [shape = 's32[1]{0}', space=sflag, size = 0x4, scoped, tag = 'scoped memory for tpu_custom_call.1']
    #allocation13 [shape = 'u8[4096]{0}', space=vmem, size = 0x1000, scoped, tag = 'output window, operand 2, single buffered']
    %12 = vsyncpa [#allocation5], 0
    %13 = vsyncpa [#allocation8], 0
    %14 = vsyncpa [#allocation6], 0
    %15 = vsyncpa [#allocation12], 0
    // Predicated region
    $region2: #{tpu_custom_call.1} parent=1 // pred_check
      _
    $region3: #{tpu_custom_call.1} parent=1 // pred_check_branch
      %17 = sbr.rel (0) target = $region5
    $region4: #{tpu_custom_call.1} parent=1 // pred_region
      %s19 = ssub.s32 1024, 1024
      %20 = vsyncadd [#allocation5], %s19
      %s21 = sshll.u32 [#allocation4], 4
      %s22 = int_to_ptr.vmem [resolvable:$true] %s21
      %27 = dma.hbm_to_vmem [thread:$0]  %s0, 1024, %s22, [#allocation5], 128, 128, 8
    $region5: #{tpu_custom_call.1} parent=1 // pred_fallthru
      _
    // Predicated region
    $region6: #{tpu_custom_call.1} parent=1 // pred_check
      _
    $region7: #{tpu_custom_call.1} parent=1 // pred_check_branch
      %29 = sbr.rel (0) target = $region9
    $region8: #{tpu_custom_call.1} parent=1 // pred_region
      %s31 = ssub.s32 512, 512
      %32 = vsyncadd [#allocation8], %s31
      %s33 = sshll.u32 [#allocation7], 4
      %s34 = int_to_ptr.vmem [resolvable:$true] %s33
      %39 = dma.hbm_to_vmem [thread:$0]  %s1, 512, %s34, [#allocation8], 128, 128, 8
    $region9: #{tpu_custom_call.1} parent=1 // pred_fallthru
      _
    // Predicated region
    $region10: #{tpu_custom_call.1} parent=1 // pred_check
      _
    $region11: #{tpu_custom_call.1} parent=1 // pred_check_branch
      %41 = sbr.rel (0) target = $region13
    $region12: #{tpu_custom_call.1} parent=1 // pred_region
      %s43 = ssub.s32 128, 128
      %44 = vsyncadd [#allocation8], %s43
      %s46 = sshll.u32 [#allocation9], 4
      %s47 = int_to_ptr.vmem [resolvable:$true] %s46
      %49 = dma.hbm_to_vmem [thread:$0]  %s2, 128, %s47, [#allocation8]
    $region13: #{tpu_custom_call.1} parent=1 // pred_fallthru
      _
    // Predicated region
    $region14: #{tpu_custom_call.1} parent=1 // pred_check
      _
    $region15: #{tpu_custom_call.1} parent=1 // pred_check_branch
      %51 = sbr.rel (0) target = $region17
    $region16: #{tpu_custom_call.1} parent=1 // pred_region
      _
    $region17: #{tpu_custom_call.1} parent=1 // pred_fallthru
      _
    // Predicated region
    $region18: #{tpu_custom_call.1} parent=1 // pred_check
      _
    $region19: #{tpu_custom_call.1} parent=1 // pred_check_branch
      %53 = sbr.rel (0) target = $region21
    $region20: #{tpu_custom_call.1} parent=1 // pred_region
      %54 = dma.done [#allocation5], 1024
    $region21: #{tpu_custom_call.1} parent=1 // pred_fallthru
      _
    // Predicated region
    $region22: #{tpu_custom_call.1} parent=1 // pred_check
      _
    $region23: #{tpu_custom_call.1} parent=1 // pred_check_branch
      %56 = sbr.rel (0) target = $region25
    $region24: #{tpu_custom_call.1} parent=1 // pred_region
      %57 = dma.done [#allocation8], 512
    $region25: #{tpu_custom_call.1} parent=1 // pred_fallthru
      _
    // Predicated region
    $region26: #{tpu_custom_call.1} parent=1 // pred_check
      _
    $region27: #{tpu_custom_call.1} parent=1 // pred_check_branch
      %59 = sbr.rel (0) target = $region29
    $region28: #{tpu_custom_call.1} parent=1 // pred_region
      %60 = dma.done [#allocation8], 128
    $region29: #{tpu_custom_call.1} parent=1 // pred_fallthru
      _
    %p61 = scmp.eq.s32.totalorder 0, 0
    // Predicated region
    $region30: #{tpu_custom_call.1} parent=1 // pred_check
      %p62 = pneg %p61
    $region31: #{tpu_custom_call.1} parent=1 // pred_check_branch
      %64 = sbr.rel (%p62) target = $region33
    $region32: #{tpu_custom_call.1} parent=1 // pred_region
      %v65 = vld [vmem:[#allocation9] sm:$0xff]
      %vm66 = vcmask 261120
      %67 = vst.msk [vmem:[#allocation2] sm:$0xff] %vm66, %v65
      %v68 = vld [vmem:[%s3] sm:$0xff]
      %69 = vst.msk [vmem:[#allocation3] sm:$0xff] %vm66, %v68
    $region33: #{tpu_custom_call.1} parent=1 // pred_fallthru
      _
    %v70 = vld [vmem:[#allocation7] sm:$0xff]
    %v71 = vld [vmem:[#allocation7 + $0x8] sm:$0xff]
    %v72 = vld [vmem:[#allocation7 + $0x10] sm:$0xff]
    %v73 = vld [vmem:[#allocation7 + $0x18] sm:$0xff]
    %v74 = vld [vmem:[#allocation2] sm:$0xff]
    %v75 = vld [vmem:[#allocation3] sm:$0xff]
    %v76 = vld [vmem:[#allocation4] sm:$0xff]
    %vm77 = vcmask 261120
    %v79 = vsel %vm77, %v74, 0
    %81 = vmatprep.subr.mxu0 0.0
    %82 = vmatpush1.msra.mxu0 %v70
    %83 = vmatprep.subr.mxu0 0.0
    %84 = vmatpush1.msra.mxu0 %v71
    %85 = vmatprep.subr.mxu0 0.0
    %86 = vmatpush1.msra.mxu0 %v72
    %87 = vmatprep.subr.mxu0 0.0
    %88 = vmatpush1.msra.mxu0 %v73
    %89 = vmatprep.subr.mxu0 0.0
    %90 = vmatpush1.msra.mxu0 0.0
    %91 = vmatprep.subr.mxu0 0.0
    %92 = vmatpush1.msra.mxu0 0.0
    %93 = vmatprep.subr.mxu0 0.0
    %94 = vmatpush1.msra.mxu0 0.0
    %95 = vmatprep.subr.mxu0 0.0
    %96 = vmatpush1.msra.mxu0 0.0
    %97 = vmatprep.subr.mxu0 0.0
    %98 = vmatpush1.msra.mxu0 0.0
    %99 = vmatprep.subr.mxu0 0.0
    %100 = vmatpush1.msra.mxu0 0.0
    %101 = vmatprep.subr.mxu0 0.0
    %102 = vmatpush1.msra.mxu0 0.0
    %103 = vmatprep.subr.mxu0 0.0
    %104 = vmatpush1.msra.mxu0 0.0
    %105 = vmatprep.subr.mxu0 0.0
    %106 = vmatpush1.msra.mxu0 0.0
    %107 = vmatprep.subr.mxu0 0.0
    %108 = vmatpush1.msra.mxu0 0.0
    %109 = vmatprep.subr.mxu0 0.0
    %110 = vmatpush1.msra.mxu0 0.0
    %111 = vmatprep.subr.mxu0 0.0
    %112 = vmatpush1.msra.mxu0 0.0
    %113 = vmatprep.subr.mxu0 0.0
    %114 = vmatpush1.msra.mxu0 0.0
    %115 = vmatprep.subr.mxu0 0.0
    %116 = vmatpush1.msra.mxu0 0.0
    %117 = vmatprep.subr.mxu0 0.0
    %118 = vmatpush1.msra.mxu0 0.0
    %119 = vmatprep.subr.mxu0 0.0
    %120 = vmatpush1.msra.mxu0 0.0
    %121 = vmatprep.subr.mxu0 0.0
    %122 = vmatpush1.msra.mxu0 0.0
    %123 = vmatprep.subr.mxu0 0.0
    %124 = vmatpush1.msra.mxu0 0.0
    %125 = vmatprep.subr.mxu0 0.0
    %126 = vmatpush1.msra.mxu0 0.0
    %127 = vmatprep.subr.mxu0 0.0
    %128 = vmatpush1.msra.mxu0 0.0
    %129 = vmatprep.subr.mxu0 0.0
    %130 = vmatpush1.msra.mxu0 0.0
    %131 = vmatprep.subr.mxu0 0.0
    %132 = vmatpush1.msra.mxu0 0.0
    %133 = vmatprep.subr.mxu0 0.0
    %134 = vmatpush1.msra.mxu0 0.0
    %135 = vmatprep.subr.mxu0 0.0
    %136 = vmatpush1.msra.mxu0 0.0
    %137 = vmatprep.subr.mxu0 0.0
    %138 = vmatpush1.msra.mxu0 0.0
    %139 = vmatprep.subr.mxu0 0.0
    %140 = vmatpush1.msra.mxu0 0.0
    %141 = vmatprep.subr.mxu0 0.0
    %142 = vmatpush1.msra.mxu0 0.0
    %143 = vmatprep.subr.mxu0 0.0
    %144 = vmatpush1.msra.mxu0 0.0
    %145 = vmatprep.mubr.f32.mxu0 0.0
    %146 = vmatmul.mubr.f32.gmra.mrb[0].mxu0 %v79
    %v147 = vpop.f32.mrb[0].mxu0
    %v148 = vadd.f32 0.0, %v147
    %v149 = vpop.f32.mrb[0].mxu0
    %150 = vdwg.mxu0
    %v151 = vadd.f32 %v76, %v148
    %v152 = vxor.u32 %v151, 2147483648
    %v153 = vmul.f32 %v152, 1.442695
    %v154 = vpow.pop %v153
    %v155 = vadd.f32 %v154, 1.0
    %v156 = vrcp.pop %v155
    %v157 = vmul.f32 1.0, %v156
    %v158 = vtanh.pop %v151
    %160 = vrot.lane.b32.xlu0 %v75, 32
    %v161 = vpop.permute.xlu0 %160
    %v163 = vmul.f32 %v157, %v161
    %165 = vrot.lane.b32.xlu0 %v158, 64
    %v166 = vpop.permute.xlu0 %165
    %v168 = vmul.f32 %v157, %v166
    %170 = vrot.lane.b32.xlu0 %v168, 32
    %v171 = vpop.permute.xlu0 %170
    %v173 = vadd.f32 %v163, %v171
    %v174 = vtanh.pop %v173
    %176 = vrot.lane.b32.xlu0 %v174, 64
    %v177 = vpop.permute.xlu0 %176
    %v179 = vmul.f32 %v157, %v177
    %181 = vrot.lane.b32.xlu0 %v179, 32
    %v182 = vpop.permute.xlu0 %181
    %184 = vst.msk [vmem:[#allocation10] sm:$0xff] %vm77, %v182
    %s185 = scalar_lea.vmem [#allocation4], 8
    %v186 = vld [vmem:[%s185] sm:$0xff]
    %v187 = vsel %vm77, %v182, 0
    %189 = vmatprep.subr.mxu0 0.0
    %190 = vmatpush1.msra.mxu0 %v70
    %191 = vmatprep.subr.mxu0 0.0
    %192 = vmatpush1.msra.mxu0 %v71
    %193 = vmatprep.subr.mxu0 0.0
    %194 = vmatpush1.msra.mxu0 %v72
    %195 = vmatprep.subr.mxu0 0.0
    %196 = vmatpush1.msra.mxu0 %v73
    %197 = vmatprep.subr.mxu0 0.0
    %198 = vmatpush1.msra.mxu0 0.0
    %199 = vmatprep.subr.mxu0 0.0
    %200 = vmatpush1.msra.mxu0 0.0
    %201 = vmatprep.subr.mxu0 0.0
    %202 = vmatpush1.msra.mxu0 0.0
    %203 = vmatprep.subr.mxu0 0.0
    %204 = vmatpush1.msra.mxu0 0.0
    %205 = vmatprep.subr.mxu0 0.0
    %206 = vmatpush1.msra.mxu0 0.0
    %207 = vmatprep.subr.mxu0 0.0
    %208 = vmatpush1.msra.mxu0 0.0
    %209 = vmatprep.subr.mxu0 0.0
    %210 = vmatpush1.msra.mxu0 0.0
    %211 = vmatprep.subr.mxu0 0.0
    %212 = vmatpush1.msra.mxu0 0.0
    %213 = vmatprep.subr.mxu0 0.0
    %214 = vmatpush1.msra.mxu0 0.0
    %215 = vmatprep.subr.mxu0 0.0
    %216 = vmatpush1.msra.mxu0 0.0
    %217 = vmatprep.subr.mxu0 0.0
    %218 = vmatpush1.msra.mxu0 0.0
    %219 = vmatprep.subr.mxu0 0.0
    %220 = vmatpush1.msra.mxu0 0.0
    %221 = vmatprep.subr.mxu0 0.0
    %222 = vmatpush1.msra.mxu0 0.0
    %223 = vmatprep.subr.mxu0 0.0
    %224 = vmatpush1.msra.mxu0 0.0
    %225 = vmatprep.subr.mxu0 0.0
    %226 = vmatpush1.msra.mxu0 0.0
    %227 = vmatprep.subr.mxu0 0.0
    %228 = vmatpush1.msra.mxu0 0.0
    %229 = vmatprep.subr.mxu0 0.0
    %230 = vmatpush1.msra.mxu0 0.0
    %231 = vmatprep.subr.mxu0 0.0
    %232 = vmatpush1.msra.mxu0 0.0
    %233 = vmatprep.subr.mxu0 0.0
    %234 = vmatpush1.msra.mxu0 0.0
    %235 = vmatprep.subr.mxu0 0.0
    %236 = vmatpush1.msra.mxu0 0.0
    %237 = vmatprep.subr.mxu0 0.0
    %238 = vmatpush1.msra.mxu0 0.0
    %239 = vmatprep.subr.mxu0 0.0
    %240 = vmatpush1.msra.mxu0 0.0
    %241 = vmatprep.subr.mxu0 0.0
    %242 = vmatpush1.msra.mxu0 0.0
    %243 = vmatprep.subr.mxu0 0.0
    %244 = vmatpush1.msra.mxu0 0.0
    %245 = vmatprep.subr.mxu0 0.0
    %246 = vmatpush1.msra.mxu0 0.0
    %247 = vmatprep.subr.mxu0 0.0
    %248 = vmatpush1.msra.mxu0 0.0
    %249 = vmatprep.subr.mxu0 0.0
    %250 = vmatpush1.msra.mxu0 0.0
    %251 = vmatprep.subr.mxu0 0.0
    %252 = vmatpush1.msra.mxu0 0.0
    %253 = vmatprep.mubr.f32.mxu0 0.0
    %254 = vmatmul.mubr.f32.gmra.mrb[0].mxu0 %v187
    %v255 = vpop.f32.mrb[0].mxu0
    %v256 = vadd.f32 0.0, %v255
    %v257 = vpop.f32.mrb[0].mxu0
    %258 = vdwg.mxu0
    %v259 = vadd.f32 %v186, %v256
    %v260 = vxor.u32 %v259, 2147483648
    %v261 = vmul.f32 %v260, 1.442695
    %v262 = vpow.pop %v261
    %v263 = vadd.f32 %v262, 1.0
    %v264 = vrcp.pop %v263
    %v265 = vmul.f32 1.0, %v264
    %v266 = vtanh.pop %v259
    %v267 = vmul.f32 %v265, %v173
    %269 = vrot.lane.b32.xlu0 %v266, 64
    %v270 = vpop.permute.xlu0 %269
    %v272 = vmul.f32 %v265, %v270
    %274 = vrot.lane.b32.xlu0 %v272, 32
    %v275 = vpop.permute.xlu0 %274
    %v277 = vadd.f32 %v267, %v275
    %v278 = vtanh.pop %v277
    %280 = vrot.lane.b32.xlu0 %v278, 64
    %v281 = vpop.permute.xlu0 %280
    %v283 = vmul.f32 %v265, %v281
    %285 = vrot.lane.b32.xlu0 %v283, 32
    %v286 = vpop.permute.xlu0 %285
    %s288 = scalar_lea.vmem [#allocation10], 8
    %289 = vst.msk [vmem:[%s288] sm:$0xff] %vm77, %v286
    %s290 = scalar_lea.vmem [#allocation4], 16
    %v291 = vld [vmem:[%s290] sm:$0xff]
    %v292 = vsel %vm77, %v286, 0
    %294 = vmatprep.subr.mxu0 0.0
    %295 = vmatpush1.msra.mxu0 %v70
    %296 = vmatprep.subr.mxu0 0.0
    %297 = vmatpush1.msra.mxu0 %v71
    %298 = vmatprep.subr.mxu0 0.0
    %299 = vmatpush1.msra.mxu0 %v72
    %300 = vmatprep.subr.mxu0 0.0
    %301 = vmatpush1.msra.mxu0 %v73
    %302 = vmatprep.subr.mxu0 0.0
    %303 = vmatpush1.msra.mxu0 0.0
    %304 = vmatprep.subr.mxu0 0.0
    %305 = vmatpush1.msra.mxu0 0.0
    %306 = vmatprep.subr.mxu0 0.0
    %307 = vmatpush1.msra.mxu0 0.0
    %308 = vmatprep.subr.mxu0 0.0
    %309 = vmatpush1.msra.mxu0 0.0
    %310 = vmatprep.subr.mxu0 0.0
    %311 = vmatpush1.msra.mxu0 0.0
    %312 = vmatprep.subr.mxu0 0.0
    %313 = vmatpush1.msra.mxu0 0.0
    %314 = vmatprep.subr.mxu0 0.0
    %315 = vmatpush1.msra.mxu0 0.0
    %316 = vmatprep.subr.mxu0 0.0
    %317 = vmatpush1.msra.mxu0 0.0
    %318 = vmatprep.subr.mxu0 0.0
    %319 = vmatpush1.msra.mxu0 0.0
    %320 = vmatprep.subr.mxu0 0.0
    %321 = vmatpush1.msra.mxu0 0.0
    %322 = vmatprep.subr.mxu0 0.0
    %323 = vmatpush1.msra.mxu0 0.0
    %324 = vmatprep.subr.mxu0 0.0
    %325 = vmatpush1.msra.mxu0 0.0
    %326 = vmatprep.subr.mxu0 0.0
    %327 = vmatpush1.msra.mxu0 0.0
    %328 = vmatprep.subr.mxu0 0.0
    %329 = vmatpush1.msra.mxu0 0.0
    %330 = vmatprep.subr.mxu0 0.0
    %331 = vmatpush1.msra.mxu0 0.0
    %332 = vmatprep.subr.mxu0 0.0
    %333 = vmatpush1.msra.mxu0 0.0
    %334 = vmatprep.subr.mxu0 0.0
    %335 = vmatpush1.msra.mxu0 0.0
    %336 = vmatprep.subr.mxu0 0.0
    %337 = vmatpush1.msra.mxu0 0.0
    %338 = vmatprep.subr.mxu0 0.0
    %339 = vmatpush1.msra.mxu0 0.0
    %340 = vmatprep.subr.mxu0 0.0
    %341 = vmatpush1.msra.mxu0 0.0
    %342 = vmatprep.subr.mxu0 0.0
    %343 = vmatpush1.msra.mxu0 0.0
    %344 = vmatprep.subr.mxu0 0.0
    %345 = vmatpush1.msra.mxu0 0.0
    %346 = vmatprep.subr.mxu0 0.0
    %347 = vmatpush1.msra.mxu0 0.0
    %348 = vmatprep.subr.mxu0 0.0
    %349 = vmatpush1.msra.mxu0 0.0
    %350 = vmatprep.subr.mxu0 0.0
    %351 = vmatpush1.msra.mxu0 0.0
    %352 = vmatprep.subr.mxu0 0.0
    %353 = vmatpush1.msra.mxu0 0.0
    %354 = vmatprep.subr.mxu0 0.0
    %355 = vmatpush1.msra.mxu0 0.0
    %356 = vmatprep.subr.mxu0 0.0
    %357 = vmatpush1.msra.mxu0 0.0
    %358 = vmatprep.mubr.f32.mxu0 0.0
    %359 = vmatmul.mubr.f32.gmra.mrb[0].mxu0 %v292
    %v360 = vpop.f32.mrb[0].mxu0
    %v361 = vadd.f32 0.0, %v360
    %v362 = vpop.f32.mrb[0].mxu0
    %363 = vdwg.mxu0
    %v364 = vadd.f32 %v291, %v361
    %v365 = vxor.u32 %v364, 2147483648
    %v366 = vmul.f32 %v365, 1.442695
    %v367 = vpow.pop %v366
    %v368 = vadd.f32 %v367, 1.0
    %v369 = vrcp.pop %v368
    %v370 = vmul.f32 1.0, %v369
    %v371 = vtanh.pop %v364
    %v372 = vmul.f32 %v370, %v277
    %374 = vrot.lane.b32.xlu0 %v371, 64
    %v375 = vpop.permute.xlu0 %374
    %v377 = vmul.f32 %v370, %v375
    %379 = vrot.lane.b32.xlu0 %v377, 32
    %v380 = vpop.permute.xlu0 %379
    %v382 = vadd.f32 %v372, %v380
    %v383 = vtanh.pop %v382
    %385 = vrot.lane.b32.xlu0 %v383, 64
    %v386 = vpop.permute.xlu0 %385
    %v388 = vmul.f32 %v370, %v386
    %390 = vrot.lane.b32.xlu0 %v388, 32
    %v391 = vpop.permute.xlu0 %390
    %s393 = scalar_lea.vmem [#allocation10], 16
    %394 = vst.msk [vmem:[%s393] sm:$0xff] %vm77, %v391
    %s395 = scalar_lea.vmem [#allocation4], 24
    %v396 = vld [vmem:[%s395] sm:$0xff]
    %v397 = vsel %vm77, %v391, 0
    %399 = vmatprep.subr.mxu0 0.0
    %400 = vmatpush1.msra.mxu0 %v70
    %401 = vmatprep.subr.mxu0 0.0
    %402 = vmatpush1.msra.mxu0 %v71
    %403 = vmatprep.subr.mxu0 0.0
    %404 = vmatpush1.msra.mxu0 %v72
    %405 = vmatprep.subr.mxu0 0.0
    %406 = vmatpush1.msra.mxu0 %v73
    %407 = vmatprep.subr.mxu0 0.0
    %408 = vmatpush1.msra.mxu0 0.0
    %409 = vmatprep.subr.mxu0 0.0
    %410 = vmatpush1.msra.mxu0 0.0
    %411 = vmatprep.subr.mxu0 0.0
    %412 = vmatpush1.msra.mxu0 0.0
    %413 = vmatprep.subr.mxu0 0.0
    %414 = vmatpush1.msra.mxu0 0.0
    %415 = vmatprep.subr.mxu0 0.0
    %416 = vmatpush1.msra.mxu0 0.0
    %417 = vmatprep.subr.mxu0 0.0
    %418 = vmatpush1.msra.mxu0 0.0
    %419 = vmatprep.subr.mxu0 0.0
    %420 = vmatpush1.msra.mxu0 0.0
    %421 = vmatprep.subr.mxu0 0.0
    %422 = vmatpush1.msra.mxu0 0.0
    %423 = vmatprep.subr.mxu0 0.0
    %424 = vmatpush1.msra.mxu0 0.0
    %425 = vmatprep.subr.mxu0 0.0
    %426 = vmatpush1.msra.mxu0 0.0
    %427 = vmatprep.subr.mxu0 0.0
    %428 = vmatpush1.msra.mxu0 0.0
    %429 = vmatprep.subr.mxu0 0.0
    %430 = vmatpush1.msra.mxu0 0.0
    %431 = vmatprep.subr.mxu0 0.0
    %432 = vmatpush1.msra.mxu0 0.0
    %433 = vmatprep.subr.mxu0 0.0
    %434 = vmatpush1.msra.mxu0 0.0
    %435 = vmatprep.subr.mxu0 0.0
    %436 = vmatpush1.msra.mxu0 0.0
    %437 = vmatprep.subr.mxu0 0.0
    %438 = vmatpush1.msra.mxu0 0.0
    %439 = vmatprep.subr.mxu0 0.0
    %440 = vmatpush1.msra.mxu0 0.0
    %441 = vmatprep.subr.mxu0 0.0
    %442 = vmatpush1.msra.mxu0 0.0
    %443 = vmatprep.subr.mxu0 0.0
    %444 = vmatpush1.msra.mxu0 0.0
    %445 = vmatprep.subr.mxu0 0.0
    %446 = vmatpush1.msra.mxu0 0.0
    %447 = vmatprep.subr.mxu0 0.0
    %448 = vmatpush1.msra.mxu0 0.0
    %449 = vmatprep.subr.mxu0 0.0
    %450 = vmatpush1.msra.mxu0 0.0
    %451 = vmatprep.subr.mxu0 0.0
    %452 = vmatpush1.msra.mxu0 0.0
    %453 = vmatprep.subr.mxu0 0.0
    %454 = vmatpush1.msra.mxu0 0.0
    %455 = vmatprep.subr.mxu0 0.0
    %456 = vmatpush1.msra.mxu0 0.0
    %457 = vmatprep.subr.mxu0 0.0
    %458 = vmatpush1.msra.mxu0 0.0
    %459 = vmatprep.subr.mxu0 0.0
    %460 = vmatpush1.msra.mxu0 0.0
    %461 = vmatprep.subr.mxu0 0.0
    %462 = vmatpush1.msra.mxu0 0.0
    %463 = vmatprep.mubr.f32.mxu0 0.0
    %464 = vmatmul.mubr.f32.gmra.mrb[0].mxu0 %v397
    %v465 = vpop.f32.mrb[0].mxu0
    %v466 = vadd.f32 0.0, %v465
    %v467 = vpop.f32.mrb[0].mxu0
    %468 = vdwg.mxu0
    %v469 = vadd.f32 %v396, %v466
    %v470 = vxor.u32 %v469, 2147483648
    %v471 = vmul.f32 %v470, 1.442695
    %v472 = vpow.pop %v471
    %v473 = vadd.f32 %v472, 1.0
    %v474 = vrcp.pop %v473
    %v475 = vmul.f32 1.0, %v474
    %v476 = vtanh.pop %v469
    %v477 = vmul.f32 %v475, %v382
    %479 = vrot.lane.b32.xlu0 %v476, 64
    %v480 = vpop.permute.xlu0 %479
    %v482 = vmul.f32 %v475, %v480
    %484 = vrot.lane.b32.xlu0 %v482, 32
    %v485 = vpop.permute.xlu0 %484
    %v487 = vadd.f32 %v477, %v485
    %v488 = vtanh.pop %v487
    %490 = vrot.lane.b32.xlu0 %v488, 64
    %v491 = vpop.permute.xlu0 %490
    %v493 = vmul.f32 %v475, %v491
    %495 = vrot.lane.b32.xlu0 %v493, 32
    %v496 = vpop.permute.xlu0 %495
    %s498 = scalar_lea.vmem [#allocation10], 24
    %499 = vst.msk [vmem:[%s498] sm:$0xff] %vm77, %v496
    %s500 = scalar_lea.vmem [#allocation4], 32
    %v501 = vld [vmem:[%s500] sm:$0xff]
    %v502 = vsel %vm77, %v496, 0
    %504 = vmatprep.subr.mxu0 0.0
    %505 = vmatpush1.msra.mxu0 %v70
    %506 = vmatprep.subr.mxu0 0.0
    %507 = vmatpush1.msra.mxu0 %v71
    %508 = vmatprep.subr.mxu0 0.0
    %509 = vmatpush1.msra.mxu0 %v72
    %510 = vmatprep.subr.mxu0 0.0
    %511 = vmatpush1.msra.mxu0 %v73
    %512 = vmatprep.subr.mxu0 0.0
    %513 = vmatpush1.msra.mxu0 0.0
    %514 = vmatprep.subr.mxu0 0.0
    %515 = vmatpush1.msra.mxu0 0.0
    %516 = vmatprep.subr.mxu0 0.0
    %517 = vmatpush1.msra.mxu0 0.0
    %518 = vmatprep.subr.mxu0 0.0
    %519 = vmatpush1.msra.mxu0 0.0
    %520 = vmatprep.subr.mxu0 0.0
    %521 = vmatpush1.msra.mxu0 0.0
    %522 = vmatprep.subr.mxu0 0.0
    %523 = vmatpush1.msra.mxu0 0.0
    %524 = vmatprep.subr.mxu0 0.0
    %525 = vmatpush1.msra.mxu0 0.0
    %526 = vmatprep.subr.mxu0 0.0
    %527 = vmatpush1.msra.mxu0 0.0
    %528 = vmatprep.subr.mxu0 0.0
    %529 = vmatpush1.msra.mxu0 0.0
    %530 = vmatprep.subr.mxu0 0.0
    %531 = vmatpush1.msra.mxu0 0.0
    %532 = vmatprep.subr.mxu0 0.0
    %533 = vmatpush1.msra.mxu0 0.0
    %534 = vmatprep.subr.mxu0 0.0
    %535 = vmatpush1.msra.mxu0 0.0
    %536 = vmatprep.subr.mxu0 0.0
    %537 = vmatpush1.msra.mxu0 0.0
    %538 = vmatprep.subr.mxu0 0.0
    %539 = vmatpush1.msra.mxu0 0.0
    %540 = vmatprep.subr.mxu0 0.0
    %541 = vmatpush1.msra.mxu0 0.0
    %542 = vmatprep.subr.mxu0 0.0
    %543 = vmatpush1.msra.mxu0 0.0
    %544 = vmatprep.subr.mxu0 0.0
    %545 = vmatpush1.msra.mxu0 0.0
    %546 = vmatprep.subr.mxu0 0.0
    %547 = vmatpush1.msra.mxu0 0.0
    %548 = vmatprep.subr.mxu0 0.0
    %549 = vmatpush1.msra.mxu0 0.0
    %550 = vmatprep.subr.mxu0 0.0
    %551 = vmatpush1.msra.mxu0 0.0
    %552 = vmatprep.subr.mxu0 0.0
    %553 = vmatpush1.msra.mxu0 0.0
    %554 = vmatprep.subr.mxu0 0.0
    %555 = vmatpush1.msra.mxu0 0.0
    %556 = vmatprep.subr.mxu0 0.0
    %557 = vmatpush1.msra.mxu0 0.0
    %558 = vmatprep.subr.mxu0 0.0
    %559 = vmatpush1.msra.mxu0 0.0
    %560 = vmatprep.subr.mxu0 0.0
    %561 = vmatpush1.msra.mxu0 0.0
    %562 = vmatprep.subr.mxu0 0.0
    %563 = vmatpush1.msra.mxu0 0.0
    %564 = vmatprep.subr.mxu0 0.0
    %565 = vmatpush1.msra.mxu0 0.0
    %566 = vmatprep.subr.mxu0 0.0
    %567 = vmatpush1.msra.mxu0 0.0
    %568 = vmatprep.mubr.f32.mxu0 0.0
    %569 = vmatmul.mubr.f32.gmra.mrb[0].mxu0 %v502
    %v570 = vpop.f32.mrb[0].mxu0
    %v571 = vadd.f32 0.0, %v570
    %v572 = vpop.f32.mrb[0].mxu0
    %573 = vdwg.mxu0
    %v574 = vadd.f32 %v501, %v571
    %v575 = vxor.u32 %v574, 2147483648
    %v576 = vmul.f32 %v575, 1.442695
    %v577 = vpow.pop %v576
    %v578 = vadd.f32 %v577, 1.0
    %v579 = vrcp.pop %v578
    %v580 = vmul.f32 1.0, %v579
    %v581 = vtanh.pop %v574
    %v582 = vmul.f32 %v580, %v487
    %584 = vrot.lane.b32.xlu0 %v581, 64
    %v585 = vpop.permute.xlu0 %584
    %v587 = vmul.f32 %v580, %v585
    %589 = vrot.lane.b32.xlu0 %v587, 32
    %v590 = vpop.permute.xlu0 %589
    %v592 = vadd.f32 %v582, %v590
    %v593 = vtanh.pop %v592
    %595 = vrot.lane.b32.xlu0 %v593, 64
    %v596 = vpop.permute.xlu0 %595
    %v598 = vmul.f32 %v580, %v596
    %600 = vrot.lane.b32.xlu0 %v598, 32
    %v601 = vpop.permute.xlu0 %600
    %s603 = scalar_lea.vmem [#allocation10], 32
    %604 = vst.msk [vmem:[%s603] sm:$0xff] %vm77, %v601
    %s605 = scalar_lea.vmem [#allocation4], 40
    %v606 = vld [vmem:[%s605] sm:$0xff]
    %v607 = vsel %vm77, %v601, 0
    %609 = vmatprep.subr.mxu0 0.0
    %610 = vmatpush1.msra.mxu0 %v70
    %611 = vmatprep.subr.mxu0 0.0
    %612 = vmatpush1.msra.mxu0 %v71
    %613 = vmatprep.subr.mxu0 0.0
    %614 = vmatpush1.msra.mxu0 %v72
    %615 = vmatprep.subr.mxu0 0.0
    %616 = vmatpush1.msra.mxu0 %v73
    %617 = vmatprep.subr.mxu0 0.0
    %618 = vmatpush1.msra.mxu0 0.0
    %619 = vmatprep.subr.mxu0 0.0
    %620 = vmatpush1.msra.mxu0 0.0
    %621 = vmatprep.subr.mxu0 0.0
    %622 = vmatpush1.msra.mxu0 0.0
    %623 = vmatprep.subr.mxu0 0.0
    %624 = vmatpush1.msra.mxu0 0.0
    %625 = vmatprep.subr.mxu0 0.0
    %626 = vmatpush1.msra.mxu0 0.0
    %627 = vmatprep.subr.mxu0 0.0
    %628 = vmatpush1.msra.mxu0 0.0
    %629 = vmatprep.subr.mxu0 0.0
    %630 = vmatpush1.msra.mxu0 0.0
    %631 = vmatprep.subr.mxu0 0.0
    %632 = vmatpush1.msra.mxu0 0.0
    %633 = vmatprep.subr.mxu0 0.0
    %634 = vmatpush1.msra.mxu0 0.0
    %635 = vmatprep.subr.mxu0 0.0
    %636 = vmatpush1.msra.mxu0 0.0
    %637 = vmatprep.subr.mxu0 0.0
    %638 = vmatpush1.msra.mxu0 0.0
    %639 = vmatprep.subr.mxu0 0.0
    %640 = vmatpush1.msra.mxu0 0.0
    %641 = vmatprep.subr.mxu0 0.0
    %642 = vmatpush1.msra.mxu0 0.0
    %643 = vmatprep.subr.mxu0 0.0
    %644 = vmatpush1.msra.mxu0 0.0
    %645 = vmatprep.subr.mxu0 0.0
    %646 = vmatpush1.msra.mxu0 0.0
    %647 = vmatprep.subr.mxu0 0.0
    %648 = vmatpush1.msra.mxu0 0.0
    %649 = vmatprep.subr.mxu0 0.0
    %650 = vmatpush1.msra.mxu0 0.0
    %651 = vmatprep.subr.mxu0 0.0
    %652 = vmatpush1.msra.mxu0 0.0
    %653 = vmatprep.subr.mxu0 0.0
    %654 = vmatpush1.msra.mxu0 0.0
    %655 = vmatprep.subr.mxu0 0.0
    %656 = vmatpush1.msra.mxu0 0.0
    %657 = vmatprep.subr.mxu0 0.0
    %658 = vmatpush1.msra.mxu0 0.0
    %659 = vmatprep.subr.mxu0 0.0
    %660 = vmatpush1.msra.mxu0 0.0
    %661 = vmatprep.subr.mxu0 0.0
    %662 = vmatpush1.msra.mxu0 0.0
    %663 = vmatprep.subr.mxu0 0.0
    %664 = vmatpush1.msra.mxu0 0.0
    %665 = vmatprep.subr.mxu0 0.0
    %666 = vmatpush1.msra.mxu0 0.0
    %667 = vmatprep.subr.mxu0 0.0
    %668 = vmatpush1.msra.mxu0 0.0
    %669 = vmatprep.subr.mxu0 0.0
    %670 = vmatpush1.msra.mxu0 0.0
    %671 = vmatprep.subr.mxu0 0.0
    %672 = vmatpush1.msra.mxu0 0.0
    %673 = vmatprep.mubr.f32.mxu0 0.0
    %674 = vmatmul.mubr.f32.gmra.mrb[0].mxu0 %v607
    %v675 = vpop.f32.mrb[0].mxu0
    %v676 = vadd.f32 0.0, %v675
    %v677 = vpop.f32.mrb[0].mxu0
    %678 = vdwg.mxu0
    %v679 = vadd.f32 %v606, %v676
    %v680 = vxor.u32 %v679, 2147483648
    %v681 = vmul.f32 %v680, 1.442695
    %v682 = vpow.pop %v681
    %v683 = vadd.f32 %v682, 1.0
    %v684 = vrcp.pop %v683
    %v685 = vmul.f32 1.0, %v684
    %v686 = vtanh.pop %v679
    %v687 = vmul.f32 %v685, %v592
    %689 = vrot.lane.b32.xlu0 %v686, 64
    %v690 = vpop.permute.xlu0 %689
    %v692 = vmul.f32 %v685, %v690
    %694 = vrot.lane.b32.xlu0 %v692, 32
    %v695 = vpop.permute.xlu0 %694
    %v697 = vadd.f32 %v687, %v695
    %v698 = vtanh.pop %v697
    %700 = vrot.lane.b32.xlu0 %v698, 64
    %v701 = vpop.permute.xlu0 %700
    %v703 = vmul.f32 %v685, %v701
    %705 = vrot.lane.b32.xlu0 %v703, 32
    %v706 = vpop.permute.xlu0 %705
    %s708 = scalar_lea.vmem [#allocation10], 40
    %709 = vst.msk [vmem:[%s708] sm:$0xff] %vm77, %v706
    %s710 = scalar_lea.vmem [#allocation4], 48
    %v711 = vld [vmem:[%s710] sm:$0xff]
    %v712 = vsel %vm77, %v706, 0
    %714 = vmatprep.subr.mxu0 0.0
    %715 = vmatpush1.msra.mxu0 %v70
    %716 = vmatprep.subr.mxu0 0.0
    %717 = vmatpush1.msra.mxu0 %v71
    %718 = vmatprep.subr.mxu0 0.0
    %719 = vmatpush1.msra.mxu0 %v72
    %720 = vmatprep.subr.mxu0 0.0
    %721 = vmatpush1.msra.mxu0 %v73
    %722 = vmatprep.subr.mxu0 0.0
    %723 = vmatpush1.msra.mxu0 0.0
    %724 = vmatprep.subr.mxu0 0.0
    %725 = vmatpush1.msra.mxu0 0.0
    %726 = vmatprep.subr.mxu0 0.0
    %727 = vmatpush1.msra.mxu0 0.0
    %728 = vmatprep.subr.mxu0 0.0
    %729 = vmatpush1.msra.mxu0 0.0
    %730 = vmatprep.subr.mxu0 0.0
    %731 = vmatpush1.msra.mxu0 0.0
    %732 = vmatprep.subr.mxu0 0.0
    %733 = vmatpush1.msra.mxu0 0.0
    %734 = vmatprep.subr.mxu0 0.0
    %735 = vmatpush1.msra.mxu0 0.0
    %736 = vmatprep.subr.mxu0 0.0
    %737 = vmatpush1.msra.mxu0 0.0
    %738 = vmatprep.subr.mxu0 0.0
    %739 = vmatpush1.msra.mxu0 0.0
    %740 = vmatprep.subr.mxu0 0.0
    %741 = vmatpush1.msra.mxu0 0.0
    %742 = vmatprep.subr.mxu0 0.0
    %743 = vmatpush1.msra.mxu0 0.0
    %744 = vmatprep.subr.mxu0 0.0
    %745 = vmatpush1.msra.mxu0 0.0
    %746 = vmatprep.subr.mxu0 0.0
    %747 = vmatpush1.msra.mxu0 0.0
    %748 = vmatprep.subr.mxu0 0.0
    %749 = vmatpush1.msra.mxu0 0.0
    %750 = vmatprep.subr.mxu0 0.0
    %751 = vmatpush1.msra.mxu0 0.0
    %752 = vmatprep.subr.mxu0 0.0
    %753 = vmatpush1.msra.mxu0 0.0
    %754 = vmatprep.subr.mxu0 0.0
    %755 = vmatpush1.msra.mxu0 0.0
    %756 = vmatprep.subr.mxu0 0.0
    %757 = vmatpush1.msra.mxu0 0.0
    %758 = vmatprep.subr.mxu0 0.0
    %759 = vmatpush1.msra.mxu0 0.0
    %760 = vmatprep.subr.mxu0 0.0
    %761 = vmatpush1.msra.mxu0 0.0
    %762 = vmatprep.subr.mxu0 0.0
    %763 = vmatpush1.msra.mxu0 0.0
    %764 = vmatprep.subr.mxu0 0.0
    %765 = vmatpush1.msra.mxu0 0.0
    %766 = vmatprep.subr.mxu0 0.0
    %767 = vmatpush1.msra.mxu0 0.0
    %768 = vmatprep.subr.mxu0 0.0
    %769 = vmatpush1.msra.mxu0 0.0
    %770 = vmatprep.subr.mxu0 0.0
    %771 = vmatpush1.msra.mxu0 0.0
    %772 = vmatprep.subr.mxu0 0.0
    %773 = vmatpush1.msra.mxu0 0.0
    %774 = vmatprep.subr.mxu0 0.0
    %775 = vmatpush1.msra.mxu0 0.0
    %776 = vmatprep.subr.mxu0 0.0
    %777 = vmatpush1.msra.mxu0 0.0
    %778 = vmatprep.mubr.f32.mxu0 0.0
    %779 = vmatmul.mubr.f32.gmra.mrb[0].mxu0 %v712
    %v780 = vpop.f32.mrb[0].mxu0
    %v781 = vadd.f32 0.0, %v780
    %v782 = vpop.f32.mrb[0].mxu0
    %783 = vdwg.mxu0
    %v784 = vadd.f32 %v711, %v781
    %v785 = vxor.u32 %v784, 2147483648
    %v786 = vmul.f32 %v785, 1.442695
    %v787 = vpow.pop %v786
    %v788 = vadd.f32 %v787, 1.0
    %v789 = vrcp.pop %v788
    %v790 = vmul.f32 1.0, %v789
    %v791 = vtanh.pop %v784
    %v792 = vmul.f32 %v790, %v697
    %794 = vrot.lane.b32.xlu0 %v791, 64
    %v795 = vpop.permute.xlu0 %794
    %v797 = vmul.f32 %v790, %v795
    %799 = vrot.lane.b32.xlu0 %v797, 32
    %v800 = vpop.permute.xlu0 %799
    %v802 = vadd.f32 %v792, %v800
    %v803 = vtanh.pop %v802
    %805 = vrot.lane.b32.xlu0 %v803, 64
    %v806 = vpop.permute.xlu0 %805
    %v808 = vmul.f32 %v790, %v806
    %810 = vrot.lane.b32.xlu0 %v808, 32
    %v811 = vpop.permute.xlu0 %810
    %s813 = scalar_lea.vmem [#allocation10], 48
    %814 = vst.msk [vmem:[%s813] sm:$0xff] %vm77, %v811
    %s815 = scalar_lea.vmem [#allocation4], 56
    %v816 = vld [vmem:[%s815] sm:$0xff]
    %v817 = vsel %vm77, %v811, 0
    %819 = vmatprep.subr.mxu0 0.0
    %820 = vmatpush1.msra.mxu0 %v70
    %821 = vmatprep.subr.mxu0 0.0
    %822 = vmatpush1.msra.mxu0 %v71
    %823 = vmatprep.subr.mxu0 0.0
    %824 = vmatpush1.msra.mxu0 %v72
    %825 = vmatprep.subr.mxu0 0.0
    %826 = vmatpush1.msra.mxu0 %v73
    %827 = vmatprep.subr.mxu0 0.0
    %828 = vmatpush1.msra.mxu0 0.0
    %829 = vmatprep.subr.mxu0 0.0
    %830 = vmatpush1.msra.mxu0 0.0
    %831 = vmatprep.subr.mxu0 0.0
    %832 = vmatpush1.msra.mxu0 0.0
    %833 = vmatprep.subr.mxu0 0.0
    %834 = vmatpush1.msra.mxu0 0.0
    %835 = vmatprep.subr.mxu0 0.0
    %836 = vmatpush1.msra.mxu0 0.0
    %837 = vmatprep.subr.mxu0 0.0
    %838 = vmatpush1.msra.mxu0 0.0
    %839 = vmatprep.subr.mxu0 0.0
    %840 = vmatpush1.msra.mxu0 0.0
    %841 = vmatprep.subr.mxu0 0.0
    %842 = vmatpush1.msra.mxu0 0.0
    %843 = vmatprep.subr.mxu0 0.0
    %844 = vmatpush1.msra.mxu0 0.0
    %845 = vmatprep.subr.mxu0 0.0
    %846 = vmatpush1.msra.mxu0 0.0
    %847 = vmatprep.subr.mxu0 0.0
    %848 = vmatpush1.msra.mxu0 0.0
    %849 = vmatprep.subr.mxu0 0.0
    %850 = vmatpush1.msra.mxu0 0.0
    %851 = vmatprep.subr.mxu0 0.0
    %852 = vmatpush1.msra.mxu0 0.0
    %853 = vmatprep.subr.mxu0 0.0
    %854 = vmatpush1.msra.mxu0 0.0
    %855 = vmatprep.subr.mxu0 0.0
    %856 = vmatpush1.msra.mxu0 0.0
    %857 = vmatprep.subr.mxu0 0.0
    %858 = vmatpush1.msra.mxu0 0.0
    %859 = vmatprep.subr.mxu0 0.0
    %860 = vmatpush1.msra.mxu0 0.0
    %861 = vmatprep.subr.mxu0 0.0
    %862 = vmatpush1.msra.mxu0 0.0
    %863 = vmatprep.subr.mxu0 0.0
    %864 = vmatpush1.msra.mxu0 0.0
    %865 = vmatprep.subr.mxu0 0.0
    %866 = vmatpush1.msra.mxu0 0.0
    %867 = vmatprep.subr.mxu0 0.0
    %868 = vmatpush1.msra.mxu0 0.0
    %869 = vmatprep.subr.mxu0 0.0
    %870 = vmatpush1.msra.mxu0 0.0
    %871 = vmatprep.subr.mxu0 0.0
    %872 = vmatpush1.msra.mxu0 0.0
    %873 = vmatprep.subr.mxu0 0.0
    %874 = vmatpush1.msra.mxu0 0.0
    %875 = vmatprep.subr.mxu0 0.0
    %876 = vmatpush1.msra.mxu0 0.0
    %877 = vmatprep.subr.mxu0 0.0
    %878 = vmatpush1.msra.mxu0 0.0
    %879 = vmatprep.subr.mxu0 0.0
    %880 = vmatpush1.msra.mxu0 0.0
    %881 = vmatprep.subr.mxu0 0.0
    %882 = vmatpush1.msra.mxu0 0.0
    %883 = vmatprep.mubr.f32.mxu0 0.0
    %884 = vmatmul.mubr.f32.gmra.mrb[0].mxu0 %v817
    %v885 = vpop.f32.mrb[0].mxu0
    %v886 = vadd.f32 0.0, %v885
    %v887 = vpop.f32.mrb[0].mxu0
    %888 = vdwg.mxu0
    %v889 = vadd.f32 %v816, %v886
    %v890 = vxor.u32 %v889, 2147483648
    %v891 = vmul.f32 %v890, 1.442695
    %v892 = vpow.pop %v891
    %v893 = vadd.f32 %v892, 1.0
    %v894 = vrcp.pop %v893
    %v895 = vmul.f32 1.0, %v894
    %v896 = vtanh.pop %v889
    %v897 = vmul.f32 %v895, %v802
    %899 = vrot.lane.b32.xlu0 %v896, 64
    %v900 = vpop.permute.xlu0 %899
    %v902 = vmul.f32 %v895, %v900
    %904 = vrot.lane.b32.xlu0 %v902, 32
    %v905 = vpop.permute.xlu0 %904
    %v907 = vadd.f32 %v897, %v905
    %v908 = vtanh.pop %v907
    %910 = vrot.lane.b32.xlu0 %v908, 64
    %v911 = vpop.permute.xlu0 %910
    %v913 = vmul.f32 %v895, %v911
    %915 = vrot.lane.b32.xlu0 %v913, 32
    %v916 = vpop.permute.xlu0 %915
    %s918 = scalar_lea.vmem [#allocation10], 56
    %919 = vst.msk [vmem:[%s918] sm:$0xff] %vm77, %v916
    %920 = vst.msk [vmem:[#allocation2] sm:$0xff] %vm77, %v916
    %922 = vrot.lane.b32.xlu0 %v907, 96
    %v923 = vpop.permute.xlu0 %922
    %925 = vst.msk [vmem:[#allocation3] sm:$0xff] %vm77, %v923
    // Predicated region
    $region34: #{tpu_custom_call.1} parent=1 // pred_check
      %p926 = pneg %p61
    $region35: #{tpu_custom_call.1} parent=1 // pred_check_branch
      %928 = sbr.rel (%p926) target = $region37
    $region36: #{tpu_custom_call.1} parent=1 // pred_region
      %929 = vst.msk [vmem:[#allocation11] sm:$0xff] %vm77, %v916
      %930 = vst.msk [vmem:[#allocation13] sm:$0xff] %vm77, %v923
    $region37: #{tpu_custom_call.1} parent=1 // pred_fallthru
      _
    // Predicated region
    $region38: #{tpu_custom_call.1} parent=1 // pred_check
      _
    $region39: #{tpu_custom_call.1} parent=1 // pred_check_branch
      %932 = sbr.rel (0) target = $region41
    $region40: #{tpu_custom_call.1} parent=1 // pred_region
      %s934 = ssub.s32 1024, 1024
      %935 = vsyncadd [#allocation6], %s934
      %s936 = sshll.u32 [#allocation10], 4
      %s937 = int_to_ptr.vmem [resolvable:$true] %s936
      %942 = dma.vmem_to_hbm [thread:$0]  %s937, 1024, %s4, [#allocation6], 128, 128, 8
    $region41: #{tpu_custom_call.1} parent=1 // pred_fallthru
      _
    // Predicated region
    $region42: #{tpu_custom_call.1} parent=1 // pred_check
      _
    $region43: #{tpu_custom_call.1} parent=1 // pred_check_branch
      %944 = sbr.rel (0) target = $region45
    $region44: #{tpu_custom_call.1} parent=1 // pred_region
      %s946 = ssub.s32 128, 128
      %947 = vsyncadd [#allocation12], %s946
      %s949 = sshll.u32 [#allocation11], 4
      %s950 = int_to_ptr.vmem [resolvable:$true] %s949
      %952 = dma.vmem_to_hbm [thread:$0]  %s950, 128, %s5, [#allocation12]
    $region45: #{tpu_custom_call.1} parent=1 // pred_fallthru
      _
    // Predicated region
    $region46: #{tpu_custom_call.1} parent=1 // pred_check
      _
    $region47: #{tpu_custom_call.1} parent=1 // pred_check_branch
      %954 = sbr.rel (0) target = $region49
    $region48: #{tpu_custom_call.1} parent=1 // pred_region
      %s956 = ssub.s32 128, 128
      %957 = vsyncadd [#allocation12], %s956
      %s959 = sshll.u32 [#allocation13], 4
      %s960 = int_to_ptr.vmem [resolvable:$true] %s959
      %962 = dma.vmem_to_hbm [thread:$0]  %s960, 128, %s6, [#allocation12]
    $region49: #{tpu_custom_call.1} parent=1 // pred_fallthru
      _
    // Predicated region
    $region50: #{tpu_custom_call.1} parent=1 // pred_check
      _
    $region51: #{tpu_custom_call.1} parent=1 // pred_check_branch
      %964 = sbr.rel (0) target = $region53
    $region52: #{tpu_custom_call.1} parent=1 // pred_region
      %965 = dma.done [#allocation6], 1024
    $region53: #{tpu_custom_call.1} parent=1 // pred_fallthru
      _
    // Predicated region
    $region54: #{tpu_custom_call.1} parent=1 // pred_check
      _
    $region55: #{tpu_custom_call.1} parent=1 // pred_check_branch
      %967 = sbr.rel (0) target = $region57
    $region56: #{tpu_custom_call.1} parent=1 // pred_region
      %968 = dma.done [#allocation12], 128
    $region57: #{tpu_custom_call.1} parent=1 // pred_fallthru
      _
    // Predicated region
    $region58: #{tpu_custom_call.1} parent=1 // pred_check
      _
    $region59: #{tpu_custom_call.1} parent=1 // pred_check_branch
      %970 = sbr.rel (0) target = $region61
    $region60: #{tpu_custom_call.1} parent=1 // pred_region
      %971 = dma.done [#allocation12], 128
    $region61: #{tpu_custom_call.1} parent=1 // pred_fallthru
      _
    %972 = vsyncpa [#allocation5], 1
    %973 = vsyncpa [#allocation8], 1
    %974 = vsyncpa [#allocation6], 1
    %975 = vsyncpa [#allocation12], 1

</llo_original>
